<compile_context>
chip_gen: v7x
topology: tpu7x:2x2x1
jax: 0.10.0
libtpu: 0.0.40
codegen_flags: <defaults>
</compile_context>

<pallas_src>
import functools

import jax
import jax.numpy as jnp
import numpy as np
from jax import lax
from jax.experimental import pallas as pl
from jax.experimental.pallas import tpu as pltpu


# ----------------------------------------------------------------------------
# Fused kernel
# ----------------------------------------------------------------------------
def _fused_encoder_kernel(x_ref, w1_ref, b1_ref, w2_ref, b2_ref,
                          sel_x1_ref, sel_xp_ref, x1_ref, xp_ref,
                          *, H, W, matmul_dtype):
    """Fused forward for `block_batch` images (one grid step).

    x_ref      : (B, Cin, H*W)    NCHW-flat input (channel rows, spatial lanes)
    w1_ref     : (9, Cm, Cin)     conv1 weights, tap t = kh*3 + kw
    b1_ref     : (Cm, 1)
    w2_ref     : (9, Cm, Cm)      conv2 weights
    b2_ref     : (Cm, 1)
    sel_x1_ref : (H*W, Ho2*Wo2)   0/1 matrix selecting the valid conv2 region
    sel_xp_ref : (H*W, Hp*Wp)     0/1 matrix selecting the 2x2-pool anchors
    x1_ref     : (B, Cm, Ho2*Wo2) conv2+ReLU output, NCHW-flat (lane-dense)
    xp_ref     : (B, Cm, Hp*Wp)   2x2 / stride-2 max-pooled output, NCHW-flat
    """
    B = x_ref.shape[0]
    HW = x_ref.shape[2]

    def conv3x3_relu(img, w_ref, b_ref):
        # img: (Ci, H*W) channel-major.  Returns relu(conv(img) + b) evaluated
        # on the FULL H*W grid; border positions (ph >= H-2 or pw >= W-2) hold
        # finite wrap-around garbage that downstream stages never read.
        img = img.astype(matmul_dtype)
        acc = None
        for kh in range(3):
            for kw in range(3):
                s = kh * W + kw
                shifted = pltpu.roll(img, HW - s, axis=1) if s else img
                d = jnp.dot(w_ref[kh * 3 + kw], shifted,
                            preferred_element_type=jnp.float32)
                acc = d if acc is None else acc + d
        return jnp.maximum(acc + b_ref[...], 0.0)            # (Cm, H*W), f32

    sel_x1 = sel_x1_ref[...]                                  # f32, exact 0/1
    sel_xp = sel_xp_ref[...]

    for b in range(B):
        a1 = conv3x3_relu(x_ref[b], w1_ref, b1_ref)           # (Cm, H*W)
        a2 = conv3x3_relu(a1, w2_ref, b2_ref)                 # (Cm, H*W)

        # x1: compact the valid (Ho2, Wo2) region -> (Cm, Ho2*Wo2) with one
        # 0/1-selection matmul (exact copy; keeps the store lane-dense and the
        # relayout off the VPU/XLU).
        x1_ref[b] = jnp.dot(a2, sel_x1,
                            preferred_element_type=jnp.float32
                            ).astype(x1_ref.dtype)

        # 2x2 / stride-2 max pool: two lane rotations give, at every position
        # p, max over {p, p+1, p+W, p+W+1}; the selection matmul then picks the
        # pool anchors (2*hp, 2*wp) -- all of which are valid conv2 outputs.
        m1 = jnp.maximum(a2, pltpu.roll(a2, HW - 1, axis=1))
        m2 = jnp.maximum(m1, pltpu.roll(m1, HW - W, axis=1))
        xp_ref[b] = jnp.dot(m2, sel_xp,
                            preferred_element_type=jnp.float32
                            ).astype(xp_ref.dtype)


# ----------------------------------------------------------------------------
# Wrapper helpers
# ----------------------------------------------------------------------------
def _prepare_params(params, matmul_dtype):
    """HWIO conv weights -> per-tap (9, Cout, Cin) matrices; biases -> (C, 1)."""
    def taps(w):                                   # (3, 3, Ci, Co) HWIO
        kh, kw, ci, co = w.shape
        return (jnp.transpose(w, (0, 1, 3, 2))     # (kh, kw, Co, Ci)
                .reshape(kh * kw, co, ci)
                .astype(matmul_dtype))
    return {"w1": taps(params["w1"]),
            "b1": jnp.asarray(params["b1"], jnp.float32).reshape(-1, 1),
            "w2": taps(params["w2"]),
            "b2": jnp.asarray(params["b2"], jnp.float32).reshape(-1, 1)}


def _selection_matrices(H, W, Ho2, Wo2, Hp, Wp):
    """Trace-time 0/1 matrices: full-grid positions -> compact outputs."""
    HW = H * W
    e = np.zeros((HW, Ho2 * Wo2), np.float32)
    src = (np.arange(Ho2)[:, None] * W + np.arange(Wo2)[None, :]).reshape(-1)
    e[src, np.arange(Ho2 * Wo2)] = 1.0
    s = np.zeros((HW, Hp * Wp), np.float32)
    anchors = (2 * np.arange(Hp)[:, None] * W
               + 2 * np.arange(Wp)[None, :]).reshape(-1)
    s[anchors, np.arange(Hp * Wp)] = 1.0
    return jnp.asarray(e), jnp.asarray(s)


# ----------------------------------------------------------------------------
# Public wrapper
# ----------------------------------------------------------------------------
def basic_encoder_block(x_nchw, params, *, matmul_dtype=jnp.float32,
                        block_batch=None):
    """Fused Pallas forward of BasicEncoderBlock.

    x_nchw : (N, Cin, H, W)  (PyTorch layout)
    params : {"w1": (3,3,Cin,Cm), "b1": (1,Cm), "w2": (3,3,Cm,Cm), "b2": (1,Cm)}
    Returns (x_pooled, x1), both NCHW, exactly like the PyTorch module.
    """
    N, Cin, H, W = x_nchw.shape
    Cm = params["w1"].shape[-1]
    assert H >= 6 and W >= 6, "spatial dims too small for two 3x3 convs + pool"
    Ho2, Wo2 = H - 4, W - 4
    Hp, Wp = Ho2 // 2, Wo2 // 2
    HW = H * W

    if block_batch is None:
        # Largest divisor of N that still leaves >= 2 grid steps (v7x has 2 TCs),
        # capped at 8 images per step.
        cap = max(1, min(8, N // 2))
        block_batch = max(d for d in range(1, cap + 1) if N % d == 0)
    assert N % block_batch == 0
    grid = (N // block_batch,)

    p = _prepare_params(params, matmul_dtype)
    sel_x1, sel_xp = _selection_matrices(H, W, Ho2, Wo2, Hp, Wp)

    # Free reshape only (no XLA transpose of the input).
    x_flat = x_nchw.reshape(N, Cin, HW)

    # Explicit scoped-VMEM budget (defaults 16/32 MiB are far below physical
    # 128/128/64 MiB); generous headroom, capped for v7x's 64 MiB.
    elem = jnp.dtype(x_nchw.dtype).itemsize
    io_bytes = 2 * 2 * block_batch * elem * (Cin * HW
                                             + Cm * (Ho2 * Wo2 + Hp * Wp))
    const_bytes = 4 * (9 * Cm * (Cin + Cm) + 2 * Cm
                       + HW * (Ho2 * Wo2 + Hp * Wp))
    live_bytes = 8 * 4 * Cm * HW * block_batch
    vmem_limit = int(min(48 * 1024 * 1024,
                         max(16 * 1024 * 1024,
                             2 * (io_bytes + const_bytes + live_bytes))))

    kernel = functools.partial(_fused_encoder_kernel, H=H, W=W,
                               matmul_dtype=matmul_dtype)
    x1_flat, xp_flat = pl.pallas_call(
        kernel,
        out_shape=(jax.ShapeDtypeStruct((N, Cm, Ho2 * Wo2), x_nchw.dtype),
                   jax.ShapeDtypeStruct((N, Cm, Hp * Wp), x_nchw.dtype)),
        grid=grid,
        in_specs=[
            pl.BlockSpec((block_batch, Cin, HW), lambda n: (n, 0, 0)),
            pl.BlockSpec((9, Cm, Cin), lambda n: (0, 0, 0)),
            pl.BlockSpec((Cm, 1), lambda n: (0, 0)),
            pl.BlockSpec((9, Cm, Cm), lambda n: (0, 0, 0)),
            pl.BlockSpec((Cm, 1), lambda n: (0, 0)),
            pl.BlockSpec((HW, Ho2 * Wo2), lambda n: (0, 0)),
            pl.BlockSpec((HW, Hp * Wp), lambda n: (0, 0)),
        ],
        out_specs=(
            pl.BlockSpec((block_batch, Cm, Ho2 * Wo2), lambda n: (n, 0, 0)),
            pl.BlockSpec((block_batch, Cm, Hp * Wp), lambda n: (n, 0, 0)),
        ),
        compiler_params=pltpu.CompilerParams(
            dimension_semantics=("parallel",),
            vmem_limit_bytes=vmem_limit),
    )(x_flat, p["w1"], p["b1"], p["w2"], p["b2"], sel_x1, sel_xp)

    # Outputs come back NCHW-flat; only free reshapes remain.
    x1 = x1_flat.reshape(N, Cm, Ho2, Wo2)
    xp = xp_flat.reshape(N, Cm, Hp, Wp)
    return xp, x1


# ----------------------------------------------------------------------------
# Pure-JAX reference (for numerical verification)
# ----------------------------------------------------------------------------
def ref_forward(x_nchw, params):
    x = jnp.transpose(x_nchw, (0, 2, 3, 1))

    def conv(x, w, b):
        y = lax.conv_general_dilated(
            x, w, window_strides=(1, 1), padding="VALID",
            dimension_numbers=("NHWC", "HWIO", "NHWC"))
        return jax.nn.relu(y + b.reshape(1, 1, 1, -1))

    h = conv(x, params["w1"], params["b1"])
    x1 = conv(h, params["w2"], params["b2"])
    xp = lax.reduce_window(x1, -jnp.inf, lax.max,
                           (1, 2, 2, 1), (1, 2, 2, 1), "VALID")
    return (jnp.transpose(xp, (0, 3, 1, 2)),
            jnp.transpose(x1, (0, 3, 1, 2)))


# ----------------------------------------------------------------------------
# Deterministic parameter init (PyTorch-style uniform bounds; synthetic)
# ----------------------------------------------------------------------------
def init_params(key, in_c, c, n):
    cn = c * n
    k1, k2, k3, k4 = jax.random.split(key, 4)

    def uconv(k, cin, cout):
        bound = 1.0 / np.sqrt(cin * 3 * 3)
        return jax.random.uniform(k, (3, 3, cin, cout), jnp.float32,
                                  -bound, bound)

    def ubias(k, cin, cout):
        bound = 1.0 / np.sqrt(cin * 3 * 3)
        return jax.random.uniform(k, (1, cout), jnp.float32, -bound, bound)

    return {
        "w1": uconv(k1, in_c, cn), "b1": ubias(k2, in_c, cn),
        "w2": uconv(k3, cn, cn), "b2": ubias(k4, cn, cn),
    }


# ----------------------------------------------------------------------------
if __name__ == "__main__":
    # Small shapes consistent with the module: in_c=4, c=8, n=2 -> c*n=16.
    N, IN_C, C, NMUL, HW_SP = 2, 4, 8, 2, 16

    key = jax.random.PRNGKey(0)
    kx, kp = jax.random.split(key)
    x = jax.random.normal(kx, (N, IN_C, HW_SP, HW_SP), jnp.float32)   # NCHW
    params = init_params(kp, IN_C, C, NMUL)

    fwd = jax.jit(basic_encoder_block)
    x_pool, x1 = fwd(x, params)
    jax.block_until_ready((x_pool, x1))

    # Shape checks (16 -> 14 -> 12 -> pool -> 6)
    assert x1.shape == (N, C * NMUL, 12, 12), x1.shape
    assert x_pool.shape == (N, C * NMUL, 6, 6), x_pool.shape

    # Numerical check vs. pure-JAX reference.
    r_pool, r1 = ref_forward(x, params)
    np.testing.assert_allclose(np.asarray(x1), np.asarray(r1),
                               rtol=1e-4, atol=1e-4)
    np.testing.assert_allclose(np.asarray(x_pool), np.asarray(r_pool),
                               rtol=1e-4, atol=1e-4)

    print("KERNEL_OK")
</pallas_src>

<mosaic_0001>
module attributes {stable_mosaic.version = 11 : i64} {
  func.func @_fused_encoder_kernel(%arg0: i32, %arg1: memref<1x4x256xf32, #tpu.memory_space<vmem>>, %arg2: memref<9x16x4xf32, #tpu.memory_space<vmem>>, %arg3: memref<16x1xf32, #tpu.memory_space<vmem>>, %arg4: memref<9x16x16xf32, #tpu.memory_space<vmem>>, %arg5: memref<16x1xf32, #tpu.memory_space<vmem>>, %arg6: memref<256x144xf32, #tpu.memory_space<vmem>>, %arg7: memref<256x36xf32, #tpu.memory_space<vmem>>, %arg8: memref<1x16x144xf32, #tpu.memory_space<vmem>>, %arg9: memref<1x16x36xf32, #tpu.memory_space<vmem>>) attributes {dimension_semantics = [#tpu.dimension_semantics<parallel>], iteration_bounds = array<i64: 2>, scalar_prefetch = 0 : i64, scratch_operands = 0 : i64, tpu.core_type = #tpu.core_type<tc>, window_params = [{transform_indices = @transform_0, window_bounds = array<i64: 1, 4, 256>}, {pipeline_mode = #tpu.pipeline_mode<synchronous>, transform_indices = @transform_1, window_bounds = array<i64: 9, 16, 4>}, {pipeline_mode = #tpu.pipeline_mode<synchronous>, transform_indices = @transform_2, window_bounds = array<i64: 16, 1>}, {pipeline_mode = #tpu.pipeline_mode<synchronous>, transform_indices = @transform_3, window_bounds = array<i64: 9, 16, 16>}, {pipeline_mode = #tpu.pipeline_mode<synchronous>, transform_indices = @transform_4, window_bounds = array<i64: 16, 1>}, {pipeline_mode = #tpu.pipeline_mode<synchronous>, transform_indices = @transform_5, window_bounds = array<i64: 256, 144>}, {pipeline_mode = #tpu.pipeline_mode<synchronous>, transform_indices = @transform_6, window_bounds = array<i64: 256, 36>}, {transform_indices = @transform_7, window_bounds = array<i64: 1, 16, 144>}, {transform_indices = @transform_8, window_bounds = array<i64: 1, 16, 36>}]} {
    %c0 = arith.constant 0 : index
    %c0_0 = arith.constant 0 : index
    %0 = vector.load %arg6[%c0, %c0_0] : memref<256x144xf32, #tpu.memory_space<vmem>>, vector<256x144xf32>
    %c0_1 = arith.constant 0 : index
    %c0_2 = arith.constant 0 : index
    %1 = vector.load %arg7[%c0_1, %c0_2] : memref<256x36xf32, #tpu.memory_space<vmem>>, vector<256x36xf32>
    %c0_3 = arith.constant 0 : index
    %c0_4 = arith.constant 0 : index
    %c0_5 = arith.constant 0 : index
    %2 = vector.load %arg1[%c0_3, %c0_4, %c0_5] : memref<1x4x256xf32, #tpu.memory_space<vmem>>, vector<1x4x256xf32>
    %3 = vector.shape_cast %2 : vector<1x4x256xf32> to vector<4x256xf32>
    %c0_6 = arith.constant 0 : index
    %c0_7 = arith.constant 0 : index
    %c0_8 = arith.constant 0 : index
    %4 = vector.load %arg2[%c0_6, %c0_7, %c0_8] : memref<9x16x4xf32, #tpu.memory_space<vmem>>, vector<1x16x4xf32>
    %5 = vector.shape_cast %4 : vector<1x16x4xf32> to vector<16x4xf32>
    %cst = arith.constant dense<0.000000e+00> : vector<16x256xf32>
    %6 = tpu.matmul %5, %3, %cst {dimension_numbers = #tpu.dot_dimension_numbers<[1], [0], [0], [1], [0, 0, 1, 1], [], []>} : vector<16x4xf32>, vector<4x256xf32>, vector<16x256xf32> -> vector<16x256xf32>
    %c255_i32 = arith.constant 255 : i32
    %7 = tpu.dynamic_rotate %3 by %c255_i32 dim 1 : vector<4x256xf32>, i32 -> vector<4x256xf32>
    %c1 = arith.constant 1 : index
    %c0_9 = arith.constant 0 : index
    %c0_10 = arith.constant 0 : index
    %8 = vector.load %arg2[%c1, %c0_9, %c0_10] : memref<9x16x4xf32, #tpu.memory_space<vmem>>, vector<1x16x4xf32>
    %9 = vector.shape_cast %8 : vector<1x16x4xf32> to vector<16x4xf32>
    %cst_11 = arith.constant dense<0.000000e+00> : vector<16x256xf32>
    %10 = tpu.matmul %9, %7, %cst_11 {dimension_numbers = #tpu.dot_dimension_numbers<[1], [0], [0], [1], [0, 0, 1, 1], [], []>} : vector<16x4xf32>, vector<4x256xf32>, vector<16x256xf32> -> vector<16x256xf32>
    %11 = arith.addf %6, %10 : vector<16x256xf32>
    %c254_i32 = arith.constant 254 : i32
    %12 = tpu.dynamic_rotate %3 by %c254_i32 dim 1 : vector<4x256xf32>, i32 -> vector<4x256xf32>
    %c2 = arith.constant 2 : index
    %c0_12 = arith.constant 0 : index
    %c0_13 = arith.constant 0 : index
    %13 = vector.load %arg2[%c2, %c0_12, %c0_13] : memref<9x16x4xf32, #tpu.memory_space<vmem>>, vector<1x16x4xf32>
    %14 = vector.shape_cast %13 : vector<1x16x4xf32> to vector<16x4xf32>
    %cst_14 = arith.constant dense<0.000000e+00> : vector<16x256xf32>
    %15 = tpu.matmul %14, %12, %cst_14 {dimension_numbers = #tpu.dot_dimension_numbers<[1], [0], [0], [1], [0, 0, 1, 1], [], []>} : vector<16x4xf32>, vector<4x256xf32>, vector<16x256xf32> -> vector<16x256xf32>
    %16 = arith.addf %11, %15 : vector<16x256xf32>
    %c240_i32 = arith.constant 240 : i32
    %17 = tpu.dynamic_rotate %3 by %c240_i32 dim 1 : vector<4x256xf32>, i32 -> vector<4x256xf32>
    %c3 = arith.constant 3 : index
    %c0_15 = arith.constant 0 : index
    %c0_16 = arith.constant 0 : index
    %18 = vector.load %arg2[%c3, %c0_15, %c0_16] : memref<9x16x4xf32, #tpu.memory_space<vmem>>, vector<1x16x4xf32>
    %19 = vector.shape_cast %18 : vector<1x16x4xf32> to vector<16x4xf32>
    %cst_17 = arith.constant dense<0.000000e+00> : vector<16x256xf32>
    %20 = tpu.matmul %19, %17, %cst_17 {dimension_numbers = #tpu.dot_dimension_numbers<[1], [0], [0], [1], [0, 0, 1, 1], [], []>} : vector<16x4xf32>, vector<4x256xf32>, vector<16x256xf32> -> vector<16x256xf32>
    %21 = arith.addf %16, %20 : vector<16x256xf32>
    %c239_i32 = arith.constant 239 : i32
    %22 = tpu.dynamic_rotate %3 by %c239_i32 dim 1 : vector<4x256xf32>, i32 -> vector<4x256xf32>
    %c4 = arith.constant 4 : index
    %c0_18 = arith.constant 0 : index
    %c0_19 = arith.constant 0 : index
    %23 = vector.load %arg2[%c4, %c0_18, %c0_19] : memref<9x16x4xf32, #tpu.memory_space<vmem>>, vector<1x16x4xf32>
    %24 = vector.shape_cast %23 : vector<1x16x4xf32> to vector<16x4xf32>
    %cst_20 = arith.constant dense<0.000000e+00> : vector<16x256xf32>
    %25 = tpu.matmul %24, %22, %cst_20 {dimension_numbers = #tpu.dot_dimension_numbers<[1], [0], [0], [1], [0, 0, 1, 1], [], []>} : vector<16x4xf32>, vector<4x256xf32>, vector<16x256xf32> -> vector<16x256xf32>
    %26 = arith.addf %21, %25 : vector<16x256xf32>
    %c238_i32 = arith.constant 238 : i32
    %27 = tpu.dynamic_rotate %3 by %c238_i32 dim 1 : vector<4x256xf32>, i32 -> vector<4x256xf32>
    %c5 = arith.constant 5 : index
    %c0_21 = arith.constant 0 : index
    %c0_22 = arith.constant 0 : index
    %28 = vector.load %arg2[%c5, %c0_21, %c0_22] : memref<9x16x4xf32, #tpu.memory_space<vmem>>, vector<1x16x4xf32>
    %29 = vector.shape_cast %28 : vector<1x16x4xf32> to vector<16x4xf32>
    %cst_23 = arith.constant dense<0.000000e+00> : vector<16x256xf32>
    %30 = tpu.matmul %29, %27, %cst_23 {dimension_numbers = #tpu.dot_dimension_numbers<[1], [0], [0], [1], [0, 0, 1, 1], [], []>} : vector<16x4xf32>, vector<4x256xf32>, vector<16x256xf32> -> vector<16x256xf32>
    %31 = arith.addf %26, %30 : vector<16x256xf32>
    %c224_i32 = arith.constant 224 : i32
    %32 = tpu.dynamic_rotate %3 by %c224_i32 dim 1 : vector<4x256xf32>, i32 -> vector<4x256xf32>
    %c6 = arith.constant 6 : index
    %c0_24 = arith.constant 0 : index
    %c0_25 = arith.constant 0 : index
    %33 = vector.load %arg2[%c6, %c0_24, %c0_25] : memref<9x16x4xf32, #tpu.memory_space<vmem>>, vector<1x16x4xf32>
    %34 = vector.shape_cast %33 : vector<1x16x4xf32> to vector<16x4xf32>
    %cst_26 = arith.constant dense<0.000000e+00> : vector<16x256xf32>
    %35 = tpu.matmul %34, %32, %cst_26 {dimension_numbers = #tpu.dot_dimension_numbers<[1], [0], [0], [1], [0, 0, 1, 1], [], []>} : vector<16x4xf32>, vector<4x256xf32>, vector<16x256xf32> -> vector<16x256xf32>
    %36 = arith.addf %31, %35 : vector<16x256xf32>
    %c223_i32 = arith.constant 223 : i32
    %37 = tpu.dynamic_rotate %3 by %c223_i32 dim 1 : vector<4x256xf32>, i32 -> vector<4x256xf32>
    %c7 = arith.constant 7 : index
    %c0_27 = arith.constant 0 : index
    %c0_28 = arith.constant 0 : index
    %38 = vector.load %arg2[%c7, %c0_27, %c0_28] : memref<9x16x4xf32, #tpu.memory_space<vmem>>, vector<1x16x4xf32>
    %39 = vector.shape_cast %38 : vector<1x16x4xf32> to vector<16x4xf32>
    %cst_29 = arith.constant dense<0.000000e+00> : vector<16x256xf32>
    %40 = tpu.matmul %39, %37, %cst_29 {dimension_numbers = #tpu.dot_dimension_numbers<[1], [0], [0], [1], [0, 0, 1, 1], [], []>} : vector<16x4xf32>, vector<4x256xf32>, vector<16x256xf32> -> vector<16x256xf32>
    %41 = arith.addf %36, %40 : vector<16x256xf32>
    %c222_i32 = arith.constant 222 : i32
    %42 = tpu.dynamic_rotate %3 by %c222_i32 dim 1 : vector<4x256xf32>, i32 -> vector<4x256xf32>
    %c8 = arith.constant 8 : index
    %c0_30 = arith.constant 0 : index
    %c0_31 = arith.constant 0 : index
    %43 = vector.load %arg2[%c8, %c0_30, %c0_31] : memref<9x16x4xf32, #tpu.memory_space<vmem>>, vector<1x16x4xf32>
    %44 = vector.shape_cast %43 : vector<1x16x4xf32> to vector<16x4xf32>
    %cst_32 = arith.constant dense<0.000000e+00> : vector<16x256xf32>
    %45 = tpu.matmul %44, %42, %cst_32 {dimension_numbers = #tpu.dot_dimension_numbers<[1], [0], [0], [1], [0, 0, 1, 1], [], []>} : vector<16x4xf32>, vector<4x256xf32>, vector<16x256xf32> -> vector<16x256xf32>
    %46 = arith.addf %41, %45 : vector<16x256xf32>
    %c0_33 = arith.constant 0 : index
    %c0_34 = arith.constant 0 : index
    %47 = vector.load %arg3[%c0_33, %c0_34] : memref<16x1xf32, #tpu.memory_space<vmem>>, vector<16x1xf32>
    %48 = vector.broadcast %47 : vector<16x1xf32> to vector<16x256xf32>
    %49 = arith.addf %46, %48 : vector<16x256xf32>
    %cst_35 = arith.constant 0.000000e+00 : f32
    %50 = vector.broadcast %cst_35 : f32 to vector<16x256xf32>
    %51 = arith.maximumf %49, %50 : vector<16x256xf32>
    %c0_36 = arith.constant 0 : index
    %c0_37 = arith.constant 0 : index
    %c0_38 = arith.constant 0 : index
    %52 = vector.load %arg4[%c0_36, %c0_37, %c0_38] : memref<9x16x16xf32, #tpu.memory_space<vmem>>, vector<1x16x16xf32>
    %53 = vector.shape_cast %52 : vector<1x16x16xf32> to vector<16x16xf32>
    %cst_39 = arith.constant dense<0.000000e+00> : vector<16x256xf32>
    %54 = tpu.matmul %53, %51, %cst_39 {dimension_numbers = #tpu.dot_dimension_numbers<[1], [0], [0], [1], [0, 0, 1, 1], [], []>} : vector<16x16xf32>, vector<16x256xf32>, vector<16x256xf32> -> vector<16x256xf32>
    %c255_i32_40 = arith.constant 255 : i32
    %55 = tpu.dynamic_rotate %51 by %c255_i32_40 dim 1 : vector<16x256xf32>, i32 -> vector<16x256xf32>
    %c1_41 = arith.constant 1 : index
    %c0_42 = arith.constant 0 : index
    %c0_43 = arith.constant 0 : index
    %56 = vector.load %arg4[%c1_41, %c0_42, %c0_43] : memref<9x16x16xf32, #tpu.memory_space<vmem>>, vector<1x16x16xf32>
    %57 = vector.shape_cast %56 : vector<1x16x16xf32> to vector<16x16xf32>
    %cst_44 = arith.constant dense<0.000000e+00> : vector<16x256xf32>
    %58 = tpu.matmul %57, %55, %cst_44 {dimension_numbers = #tpu.dot_dimension_numbers<[1], [0], [0], [1], [0, 0, 1, 1], [], []>} : vector<16x16xf32>, vector<16x256xf32>, vector<16x256xf32> -> vector<16x256xf32>
    %59 = arith.addf %54, %58 : vector<16x256xf32>
    %c254_i32_45 = arith.constant 254 : i32
    %60 = tpu.dynamic_rotate %51 by %c254_i32_45 dim 1 : vector<16x256xf32>, i32 -> vector<16x256xf32>
    %c2_46 = arith.constant 2 : index
    %c0_47 = arith.constant 0 : index
    %c0_48 = arith.constant 0 : index
    %61 = vector.load %arg4[%c2_46, %c0_47, %c0_48] : memref<9x16x16xf32, #tpu.memory_space<vmem>>, vector<1x16x16xf32>
    %62 = vector.shape_cast %61 : vector<1x16x16xf32> to vector<16x16xf32>
    %cst_49 = arith.constant dense<0.000000e+00> : vector<16x256xf32>
    %63 = tpu.matmul %62, %60, %cst_49 {dimension_numbers = #tpu.dot_dimension_numbers<[1], [0], [0], [1], [0, 0, 1, 1], [], []>} : vector<16x16xf32>, vector<16x256xf32>, vector<16x256xf32> -> vector<16x256xf32>
    %64 = arith.addf %59, %63 : vector<16x256xf32>
    %c240_i32_50 = arith.constant 240 : i32
    %65 = tpu.dynamic_rotate %51 by %c240_i32_50 dim 1 : vector<16x256xf32>, i32 -> vector<16x256xf32>
    %c3_51 = arith.constant 3 : index
    %c0_52 = arith.constant 0 : index
    %c0_53 = arith.constant 0 : index
    %66 = vector.load %arg4[%c3_51, %c0_52, %c0_53] : memref<9x16x16xf32, #tpu.memory_space<vmem>>, vector<1x16x16xf32>
    %67 = vector.shape_cast %66 : vector<1x16x16xf32> to vector<16x16xf32>
    %cst_54 = arith.constant dense<0.000000e+00> : vector<16x256xf32>
    %68 = tpu.matmul %67, %65, %cst_54 {dimension_numbers = #tpu.dot_dimension_numbers<[1], [0], [0], [1], [0, 0, 1, 1], [], []>} : vector<16x16xf32>, vector<16x256xf32>, vector<16x256xf32> -> vector<16x256xf32>
    %69 = arith.addf %64, %68 : vector<16x256xf32>
    %c239_i32_55 = arith.constant 239 : i32
    %70 = tpu.dynamic_rotate %51 by %c239_i32_55 dim 1 : vector<16x256xf32>, i32 -> vector<16x256xf32>
    %c4_56 = arith.constant 4 : index
    %c0_57 = arith.constant 0 : index
    %c0_58 = arith.constant 0 : index
    %71 = vector.load %arg4[%c4_56, %c0_57, %c0_58] : memref<9x16x16xf32, #tpu.memory_space<vmem>>, vector<1x16x16xf32>
    %72 = vector.shape_cast %71 : vector<1x16x16xf32> to vector<16x16xf32>
    %cst_59 = arith.constant dense<0.000000e+00> : vector<16x256xf32>
    %73 = tpu.matmul %72, %70, %cst_59 {dimension_numbers = #tpu.dot_dimension_numbers<[1], [0], [0], [1], [0, 0, 1, 1], [], []>} : vector<16x16xf32>, vector<16x256xf32>, vector<16x256xf32> -> vector<16x256xf32>
    %74 = arith.addf %69, %73 : vector<16x256xf32>
    %c238_i32_60 = arith.constant 238 : i32
    %75 = tpu.dynamic_rotate %51 by %c238_i32_60 dim 1 : vector<16x256xf32>, i32 -> vector<16x256xf32>
    %c5_61 = arith.constant 5 : index
    %c0_62 = arith.constant 0 : index
    %c0_63 = arith.constant 0 : index
    %76 = vector.load %arg4[%c5_61, %c0_62, %c0_63] : memref<9x16x16xf32, #tpu.memory_space<vmem>>, vector<1x16x16xf32>
    %77 = vector.shape_cast %76 : vector<1x16x16xf32> to vector<16x16xf32>
    %cst_64 = arith.constant dense<0.000000e+00> : vector<16x256xf32>
    %78 = tpu.matmul %77, %75, %cst_64 {dimension_numbers = #tpu.dot_dimension_numbers<[1], [0], [0], [1], [0, 0, 1, 1], [], []>} : vector<16x16xf32>, vector<16x256xf32>, vector<16x256xf32> -> vector<16x256xf32>
    %79 = arith.addf %74, %78 : vector<16x256xf32>
    %c224_i32_65 = arith.constant 224 : i32
    %80 = tpu.dynamic_rotate %51 by %c224_i32_65 dim 1 : vector<16x256xf32>, i32 -> vector<16x256xf32>
    %c6_66 = arith.constant 6 : index
    %c0_67 = arith.constant 0 : index
    %c0_68 = arith.constant 0 : index
    %81 = vector.load %arg4[%c6_66, %c0_67, %c0_68] : memref<9x16x16xf32, #tpu.memory_space<vmem>>, vector<1x16x16xf32>
    %82 = vector.shape_cast %81 : vector<1x16x16xf32> to vector<16x16xf32>
    %cst_69 = arith.constant dense<0.000000e+00> : vector<16x256xf32>
    %83 = tpu.matmul %82, %80, %cst_69 {dimension_numbers = #tpu.dot_dimension_numbers<[1], [0], [0], [1], [0, 0, 1, 1], [], []>} : vector<16x16xf32>, vector<16x256xf32>, vector<16x256xf32> -> vector<16x256xf32>
    %84 = arith.addf %79, %83 : vector<16x256xf32>
    %c223_i32_70 = arith.constant 223 : i32
    %85 = tpu.dynamic_rotate %51 by %c223_i32_70 dim 1 : vector<16x256xf32>, i32 -> vector<16x256xf32>
    %c7_71 = arith.constant 7 : index
    %c0_72 = arith.constant 0 : index
    %c0_73 = arith.constant 0 : index
    %86 = vector.load %arg4[%c7_71, %c0_72, %c0_73] : memref<9x16x16xf32, #tpu.memory_space<vmem>>, vector<1x16x16xf32>
    %87 = vector.shape_cast %86 : vector<1x16x16xf32> to vector<16x16xf32>
    %cst_74 = arith.constant dense<0.000000e+00> : vector<16x256xf32>
    %88 = tpu.matmul %87, %85, %cst_74 {dimension_numbers = #tpu.dot_dimension_numbers<[1], [0], [0], [1], [0, 0, 1, 1], [], []>} : vector<16x16xf32>, vector<16x256xf32>, vector<16x256xf32> -> vector<16x256xf32>
    %89 = arith.addf %84, %88 : vector<16x256xf32>
    %c222_i32_75 = arith.constant 222 : i32
    %90 = tpu.dynamic_rotate %51 by %c222_i32_75 dim 1 : vector<16x256xf32>, i32 -> vector<16x256xf32>
    %c8_76 = arith.constant 8 : index
    %c0_77 = arith.constant 0 : index
    %c0_78 = arith.constant 0 : index
    %91 = vector.load %arg4[%c8_76, %c0_77, %c0_78] : memref<9x16x16xf32, #tpu.memory_space<vmem>>, vector<1x16x16xf32>
    %92 = vector.shape_cast %91 : vector<1x16x16xf32> to vector<16x16xf32>
    %cst_79 = arith.constant dense<0.000000e+00> : vector<16x256xf32>
    %93 = tpu.matmul %92, %90, %cst_79 {dimension_numbers = #tpu.dot_dimension_numbers<[1], [0], [0], [1], [0, 0, 1, 1], [], []>} : vector<16x16xf32>, vector<16x256xf32>, vector<16x256xf32> -> vector<16x256xf32>
    %94 = arith.addf %89, %93 : vector<16x256xf32>
    %c0_80 = arith.constant 0 : index
    %c0_81 = arith.constant 0 : index
    %95 = vector.load %arg5[%c0_80, %c0_81] : memref<16x1xf32, #tpu.memory_space<vmem>>, vector<16x1xf32>
    %96 = vector.broadcast %95 : vector<16x1xf32> to vector<16x256xf32>
    %97 = arith.addf %94, %96 : vector<16x256xf32>
    %cst_82 = arith.constant 0.000000e+00 : f32
    %98 = vector.broadcast %cst_82 : f32 to vector<16x256xf32>
    %99 = arith.maximumf %97, %98 : vector<16x256xf32>
    %cst_83 = arith.constant dense<0.000000e+00> : vector<16x144xf32>
    %100 = tpu.matmul %99, %0, %cst_83 {dimension_numbers = #tpu.dot_dimension_numbers<[1], [0], [0], [1], [0, 0, 1, 1], [], []>} : vector<16x256xf32>, vector<256x144xf32>, vector<16x144xf32> -> vector<16x144xf32>
    %c0_84 = arith.constant 0 : index
    %c0_85 = arith.constant 0 : index
    %c0_86 = arith.constant 0 : index
    %101 = vector.load %arg8[%c0_84, %c0_85, %c0_86] : memref<1x16x144xf32, #tpu.memory_space<vmem>>, vector<1x16x144xf32>
    %102 = vector.shape_cast %101 : vector<1x16x144xf32> to vector<16x144xf32>
    %103 = vector.shape_cast %100 : vector<16x144xf32> to vector<1x16x144xf32>
    tpu.vector_store %arg8[%c0_84, %c0_85, %c0_86], %103 {strides = array<i32>} : memref<1x16x144xf32, #tpu.memory_space<vmem>>, vector<1x16x144xf32>,
    %c255_i32_87 = arith.constant 255 : i32
    %104 = tpu.dynamic_rotate %99 by %c255_i32_87 dim 1 : vector<16x256xf32>, i32 -> vector<16x256xf32>
    %105 = arith.maximumf %99, %104 : vector<16x256xf32>
    %c240_i32_88 = arith.constant 240 : i32
    %106 = tpu.dynamic_rotate %105 by %c240_i32_88 dim 1 : vector<16x256xf32>, i32 -> vector<16x256xf32>
    %107 = arith.maximumf %105, %106 : vector<16x256xf32>
    %cst_89 = arith.constant dense<0.000000e+00> : vector<16x36xf32>
    %108 = tpu.matmul %107, %1, %cst_89 {dimension_numbers = #tpu.dot_dimension_numbers<[1], [0], [0], [1], [0, 0, 1, 1], [], []>} : vector<16x256xf32>, vector<256x36xf32>, vector<16x36xf32> -> vector<16x36xf32>
    %c0_90 = arith.constant 0 : index
    %c0_91 = arith.constant 0 : index
    %c0_92 = arith.constant 0 : index
    %109 = vector.load %arg9[%c0_90, %c0_91, %c0_92] : memref<1x16x36xf32, #tpu.memory_space<vmem>>, vector<1x16x36xf32>
    %110 = vector.shape_cast %109 : vector<1x16x36xf32> to vector<16x36xf32>
    %111 = vector.shape_cast %108 : vector<16x36xf32> to vector<1x16x36xf32>
    tpu.vector_store %arg9[%c0_90, %c0_91, %c0_92], %111 {strides = array<i32>} : memref<1x16x36xf32, #tpu.memory_space<vmem>>, vector<1x16x36xf32>,
    return
  }
  func.func @transform_0(%arg0: i32) -> (i32, i32, i32) {
    %c0_i32 = arith.constant 0 : i32
    %c0_i32_0 = arith.constant 0 : i32
    %c0_i32_1 = arith.constant 0 : i32
    return %arg0, %c0_i32, %c0_i32_0 : i32, i32, i32
  }
  func.func @transform_1(%arg0: i32) -> (i32, i32, i32) {
    %c0_i32 = arith.constant 0 : i32
    %c0_i32_0 = arith.constant 0 : i32
    %c0_i32_1 = arith.constant 0 : i32
    %c0_i32_2 = arith.constant 0 : i32
    return %c0_i32, %c0_i32_0, %c0_i32_1 : i32, i32, i32
  }
  func.func @transform_2(%arg0: i32) -> (i32, i32) {
    %c0_i32 = arith.constant 0 : i32
    %c0_i32_0 = arith.constant 0 : i32
    %c0_i32_1 = arith.constant 0 : i32
    return %c0_i32, %c0_i32_0 : i32, i32
  }
  func.func @transform_3(%arg0: i32) -> (i32, i32, i32) {
    %c0_i32 = arith.constant 0 : i32
    %c0_i32_0 = arith.constant 0 : i32
    %c0_i32_1 = arith.constant 0 : i32
    %c0_i32_2 = arith.constant 0 : i32
    return %c0_i32, %c0_i32_0, %c0_i32_1 : i32, i32, i32
  }
  func.func @transform_4(%arg0: i32) -> (i32, i32) {
    %c0_i32 = arith.constant 0 : i32
    %c0_i32_0 = arith.constant 0 : i32
    %c0_i32_1 = arith.constant 0 : i32
    return %c0_i32, %c0_i32_0 : i32, i32
  }
  func.func @transform_5(%arg0: i32) -> (i32, i32) {
    %c0_i32 = arith.constant 0 : i32
    %c0_i32_0 = arith.constant 0 : i32
    %c0_i32_1 = arith.constant 0 : i32
    return %c0_i32, %c0_i32_0 : i32, i32
  }
  func.func @transform_6(%arg0: i32) -> (i32, i32) {
    %c0_i32 = arith.constant 0 : i32
    %c0_i32_0 = arith.constant 0 : i32
    %c0_i32_1 = arith.constant 0 : i32
    return %c0_i32, %c0_i32_0 : i32, i32
  }
  func.func @transform_7(%arg0: i32) -> (i32, i32, i32) {
    %c0_i32 = arith.constant 0 : i32
    %c0_i32_0 = arith.constant 0 : i32
    %c0_i32_1 = arith.constant 0 : i32
    return %arg0, %c0_i32, %c0_i32_0 : i32, i32, i32
  }
  func.func @transform_8(%arg0: i32) -> (i32, i32, i32) {
    %c0_i32 = arith.constant 0 : i32
    %c0_i32_0 = arith.constant 0 : i32
    %c0_i32_1 = arith.constant 0 : i32
    return %arg0, %c0_i32, %c0_i32_0 : i32, i32, i32
  }
}

</mosaic_0001>

<llo_original>
// kernel: basic_encoder_block.1
$region0: #{basic_encoder_block.1}
  #allocation0 [shape = 'u32[]', space=smem, size = 0x4, offset = 0x4, fixed_abs, tag = 'smem constant byte address 0x4 - core index']
  #allocation1 [shape = 'u32[144,128]{1,0:T(1,128)}', space=vmem, size = 0x12000, scoped, tag = 'internal scratch']
  %s0 = inlined_call_operand.vmem [shape: f32[2,4,256], index: 0, kind: input, shape index: {}]
  %s1 = inlined_call_operand.vmem [shape: f32[9,16,4], index: 1, kind: input, shape index: {}]
  %s2 = inlined_call_operand.vmem [shape: f32[16,1], index: 2, kind: input, shape index: {}]
  %s3 = inlined_call_operand.vmem [shape: f32[9,16,16], index: 3, kind: input, shape index: {}]
  %s4 = inlined_call_operand.vmem [shape: f32[16,1], index: 4, kind: input, shape index: {}]
  %s5 = inlined_call_operand.vmem [shape: f32[256,144], index: 5, kind: input, shape index: {}]
  %s6 = inlined_call_operand.hbm [shape: f32[256,36], index: 6, kind: input, shape index: {}]
  %s7 = inlined_call_operand.vmem [shape: f32[2,16,144], index: 7, kind: output, shape index: {0}]
  %s8 = inlined_call_operand.vmem [shape: f32[2,16,36], index: 8, kind: output, shape index: {1}]
  %9 = xla_tuple %s7, %s8
  %s10 = sld [smem:[#allocation0]]
  $region73: #{basic_encoder_block.1} parent=0
    _
  %s12 = ssub.s32 1, %s10
  %s13 = scalar_select 0, %s12, %s10
  $region1: #{basic_encoder_block.1} parent=0
    #allocation2 [shape = 'u8[131072]{0}', space=vmem, size = 0x20000, scoped, tag = 'input window, operand 6, single buffered']
    #allocation3 [shape = 's32[2]{0}', space=sflag, size = 0x8, scoped, tag = 'scoped memory for basic_encoder_block.1']
    %14 = vsyncpa [#allocation3], 0
    loop: start=0, step=1, limit=4
    $region2: #{basic_encoder_block.1} parent=1 // loop_pre_header
      _
    $region3: #{basic_encoder_block.1} parent=1 // loop_header
      %s16 = sphi 0, %s20
      %p17 = scmp.ge.s32.totalorder %s16, 4
      %s26 = sphi 0, %s28
      %s29 = sphi 0, %s26
      %s30 = sphi 0, %s29
      %s46 = sphi 0, %s30
      %s50 = sphi 0, %s50
      %s52 = sphi 0, %s50
      %s53 = sphi 0, %s52
      %s67 = sphi 0, %s53
      %s71 = sphi 0, %s71
      %s73 = sphi 0, %s71
      %s74 = sphi 0, %s73
      %s88 = sphi 0, %s74
      %s92 = sphi 0, %s92
      %s94 = sphi 0, %s92
      %s95 = sphi 0, %s94
      %s109 = sphi 0, %s95
      %s113 = sphi 0, %s113
      %s115 = sphi 0, %s113
      %s116 = sphi 0, %s115
      %s130 = sphi 0, %s116
      %s134 = sphi 0, %s134
      %s136 = sphi 0, %s134
      %s137 = sphi 0, %s136
      %s151 = sphi 0, %s137
      %s155 = sphi 0, %s155
      %s157 = sphi 0, %s155
      %s158 = sphi 0, %s157
      %s172 = sphi 0, %s158
      %s178 = sphi 0, %s180
      %s181 = sphi 0, %s178
      %s182 = sphi 0, %s181
      %s198 = sphi 0, %s182
      %s204 = sphi 0, %s206
      %s207 = sphi 0, %s204
      %s208 = sphi 0, %s207
      %s224 = sphi 0, %s208
    $region4: #{basic_encoder_block.1} parent=1 // loop_header_branch
      %19 = sbr.rel (%p17) target = $region8
    $region5: #{basic_encoder_block.1} parent=1 // loop_body
      %s21 = ssub.s32 %s16, 1
      %s22 = ssub.s32 %s16, 2
      %s23 = sadd.s32 %s16, 1
      %s24 = ssub.s32 %s16, %s23
      %p25 = scmp.eq.s32.totalorder %s24, 0
      %s27 = sadd.s32 %s26, 1
      %s28 = scalar_select %p25, %s26, %s27
      %p31 = pneg %p25
      %p32 = scmp.eq.s32.totalorder %s16, 1
      %p33 = por %p31, %p32
      %p34 = scmp.ne.s32.totalorder %s26, %s29
      %p35 = scmp.eq.s32.totalorder %s16, 0
      %p36 = por %p34, %p35
      %p37 = scmp.ne.s32.totalorder %s26, %s29
      %p38 = scmp.eq.s32.totalorder %s21, 1
      %p39 = por %p37, %p38
      %p40 = scmp.ne.s32.totalorder %s29, %s30
      %p41 = scmp.eq.s32.totalorder %s21, 0
      %p42 = por %p40, %p41
      %p43 = scmp.ne.s32.totalorder %s29, %s30
      %p44 = scmp.eq.s32.totalorder %s22, 1
      %p45 = por %p43, %p44
      %p47 = scmp.ne.s32.totalorder %s30, %s46
      %p48 = scmp.eq.s32.totalorder %s22, 0
      %p49 = por %p47, %p48
      %s51 = sadd.s32 %s50, 1
      %p54 = scmp.eq.s32.totalorder %s16, 1
      %p55 = scmp.ne.s32.totalorder %s50, %s52
      %p56 = scmp.eq.s32.totalorder %s16, 0
      %p57 = por %p55, %p56
      %p58 = scmp.ne.s32.totalorder %s50, %s52
      %p59 = scmp.eq.s32.totalorder %s21, 1
      %p60 = por %p58, %p59
      %p61 = scmp.ne.s32.totalorder %s52, %s53
      %p62 = scmp.eq.s32.totalorder %s21, 0
      %p63 = por %p61, %p62
      %p64 = scmp.ne.s32.totalorder %s52, %s53
      %p65 = scmp.eq.s32.totalorder %s22, 1
      %p66 = por %p64, %p65
      %p68 = scmp.ne.s32.totalorder %s53, %s67
      %p69 = scmp.eq.s32.totalorder %s22, 0
      %p70 = por %p68, %p69
      %s72 = sadd.s32 %s71, 1
      %p75 = scmp.eq.s32.totalorder %s16, 1
      %p76 = scmp.ne.s32.totalorder %s71, %s73
      %p77 = scmp.eq.s32.totalorder %s16, 0
      %p78 = por %p76, %p77
      %p79 = scmp.ne.s32.totalorder %s71, %s73
      %p80 = scmp.eq.s32.totalorder %s21, 1
      %p81 = por %p79, %p80
      %p82 = scmp.ne.s32.totalorder %s73, %s74
      %p83 = scmp.eq.s32.totalorder %s21, 0
      %p84 = por %p82, %p83
      %p85 = scmp.ne.s32.totalorder %s73, %s74
      %p86 = scmp.eq.s32.totalorder %s22, 1
      %p87 = por %p85, %p86
      %p89 = scmp.ne.s32.totalorder %s74, %s88
      %p90 = scmp.eq.s32.totalorder %s22, 0
      %p91 = por %p89, %p90
      %s93 = sadd.s32 %s92, 1
      %p96 = scmp.eq.s32.totalorder %s16, 1
      %p97 = scmp.ne.s32.totalorder %s92, %s94
      %p98 = scmp.eq.s32.totalorder %s16, 0
      %p99 = por %p97, %p98
      %p100 = scmp.ne.s32.totalorder %s92, %s94
      %p101 = scmp.eq.s32.totalorder %s21, 1
      %p102 = por %p100, %p101
      %p103 = scmp.ne.s32.totalorder %s94, %s95
      %p104 = scmp.eq.s32.totalorder %s21, 0
      %p105 = por %p103, %p104
      %p106 = scmp.ne.s32.totalorder %s94, %s95
      %p107 = scmp.eq.s32.totalorder %s22, 1
      %p108 = por %p106, %p107
      %p110 = scmp.ne.s32.totalorder %s95, %s109
      %p111 = scmp.eq.s32.totalorder %s22, 0
      %p112 = por %p110, %p111
      %s114 = sadd.s32 %s113, 1
      %p117 = scmp.eq.s32.totalorder %s16, 1
      %p118 = scmp.ne.s32.totalorder %s113, %s115
      %p119 = scmp.eq.s32.totalorder %s16, 0
      %p120 = por %p118, %p119
      %p121 = scmp.ne.s32.totalorder %s113, %s115
      %p122 = scmp.eq.s32.totalorder %s21, 1
      %p123 = por %p121, %p122
      %p124 = scmp.ne.s32.totalorder %s115, %s116
      %p125 = scmp.eq.s32.totalorder %s21, 0
      %p126 = por %p124, %p125
      %p127 = scmp.ne.s32.totalorder %s115, %s116
      %p128 = scmp.eq.s32.totalorder %s22, 1
      %p129 = por %p127, %p128
      %p131 = scmp.ne.s32.totalorder %s116, %s130
      %p132 = scmp.eq.s32.totalorder %s22, 0
      %p133 = por %p131, %p132
      %s135 = sadd.s32 %s134, 1
      %p138 = scmp.eq.s32.totalorder %s16, 1
      %p139 = scmp.ne.s32.totalorder %s134, %s136
      %p140 = scmp.eq.s32.totalorder %s16, 0
      %p141 = por %p139, %p140
      %p142 = scmp.ne.s32.totalorder %s134, %s136
      %p143 = scmp.eq.s32.totalorder %s21, 1
      %p144 = por %p142, %p143
      %p145 = scmp.ne.s32.totalorder %s136, %s137
      %p146 = scmp.eq.s32.totalorder %s21, 0
      %p147 = por %p145, %p146
      %p148 = scmp.ne.s32.totalorder %s136, %s137
      %p149 = scmp.eq.s32.totalorder %s22, 1
      %p150 = por %p148, %p149
      %p152 = scmp.ne.s32.totalorder %s137, %s151
      %p153 = scmp.eq.s32.totalorder %s22, 0
      %p154 = por %p152, %p153
      %s156 = sadd.s32 %s155, 1
      %p159 = scmp.eq.s32.totalorder %s16, 1
      %p160 = scmp.ne.s32.totalorder %s155, %s157
      %p161 = scmp.eq.s32.totalorder %s16, 0
      %p162 = por %p160, %p161
      %p163 = scmp.ne.s32.totalorder %s155, %s157
      %p164 = scmp.eq.s32.totalorder %s21, 1
      %p165 = por %p163, %p164
      %p166 = scmp.ne.s32.totalorder %s157, %s158
      %p167 = scmp.eq.s32.totalorder %s21, 0
      %p168 = por %p166, %p167
      %p169 = scmp.ne.s32.totalorder %s157, %s158
      %p170 = scmp.eq.s32.totalorder %s22, 1
      %p171 = por %p169, %p170
      %p173 = scmp.ne.s32.totalorder %s158, %s172
      %p174 = scmp.eq.s32.totalorder %s22, 0
      %p175 = por %p173, %p174
      %s176 = ssub.s32 %s16, %s23
      %p177 = scmp.eq.s32.totalorder %s176, 0
      %s179 = sadd.s32 %s178, 1
      %s180 = scalar_select %p177, %s178, %s179
      %p183 = pneg %p177
      %p184 = scmp.eq.s32.totalorder %s16, 1
      %p185 = por %p183, %p184
      %p186 = scmp.ne.s32.totalorder %s178, %s181
      %p187 = scmp.eq.s32.totalorder %s16, 0
      %p188 = por %p186, %p187
      %p189 = scmp.ne.s32.totalorder %s178, %s181
      %p190 = scmp.eq.s32.totalorder %s21, 1
      %p191 = por %p189, %p190
      %p192 = scmp.ne.s32.totalorder %s181, %s182
      %p193 = scmp.eq.s32.totalorder %s21, 0
      %p194 = por %p192, %p193
      %p195 = scmp.ne.s32.totalorder %s181, %s182
      %p196 = scmp.eq.s32.totalorder %s22, 1
      %p197 = por %p195, %p196
      %p199 = scmp.ne.s32.totalorder %s182, %s198
      %p200 = scmp.eq.s32.totalorder %s22, 0
      %p201 = por %p199, %p200
      %s202 = ssub.s32 %s16, %s23
      %p203 = scmp.eq.s32.totalorder %s202, 0
      %s205 = sadd.s32 %s204, 1
      %s206 = scalar_select %p203, %s204, %s205
      %p209 = pneg %p203
      %p210 = scmp.eq.s32.totalorder %s16, 1
      %p211 = por %p209, %p210
      %p212 = scmp.ne.s32.totalorder %s204, %s207
      %p213 = scmp.eq.s32.totalorder %s16, 0
      %p214 = por %p212, %p213
      %p215 = scmp.ne.s32.totalorder %s204, %s207
      %p216 = scmp.eq.s32.totalorder %s21, 1
      %p217 = por %p215, %p216
      %p218 = scmp.ne.s32.totalorder %s207, %s208
      %p219 = scmp.eq.s32.totalorder %s21, 0
      %p220 = por %p218, %p219
      %p221 = scmp.ne.s32.totalorder %s207, %s208
      %p222 = scmp.eq.s32.totalorder %s22, 1
      %p223 = por %p221, %p222
      %p225 = scmp.ne.s32.totalorder %s208, %s224
      %p226 = scmp.eq.s32.totalorder %s22, 0
      %p227 = por %p225, %p226
      %p228 = scmp.le.s32.totalorder 1, %s16
      %p229 = scmp.lt.s32.totalorder %s16, 3
      %p230 = pnand %p228, %p229
      %p231 = pneg %p230
      // Predicated region
      $region9: #{basic_encoder_block.1} parent=5 // pred_check
        _
      $region10: #{basic_encoder_block.1} parent=5 // pred_check_branch
        %233 = sbr.rel (%p230) target = $region12
      $region11: #{basic_encoder_block.1} parent=5 // pred_region
        %s234 = ssub.s32 %s16, 1
        // Predicated region
        $region13: #{basic_encoder_block.1} parent=11 // pred_check
          %p235 = pneg %p63
        $region14: #{basic_encoder_block.1} parent=11 // pred_check_branch
          %237 = sbr.rel (%p235) target = $region16
        $region15: #{basic_encoder_block.1} parent=11 // pred_region
          _
        $region16: #{basic_encoder_block.1} parent=11 // pred_fallthru
          _
        // Predicated region
        $region17: #{basic_encoder_block.1} parent=11 // pred_check
          %p238 = pneg %p84
        $region18: #{basic_encoder_block.1} parent=11 // pred_check_branch
          %240 = sbr.rel (%p238) target = $region20
        $region19: #{basic_encoder_block.1} parent=11 // pred_region
          _
        $region20: #{basic_encoder_block.1} parent=11 // pred_fallthru
          _
        // Predicated region
        $region21: #{basic_encoder_block.1} parent=11 // pred_check
          %p241 = pneg %p105
        $region22: #{basic_encoder_block.1} parent=11 // pred_check_branch
          %243 = sbr.rel (%p241) target = $region24
        $region23: #{basic_encoder_block.1} parent=11 // pred_region
          _
        $region24: #{basic_encoder_block.1} parent=11 // pred_fallthru
          _
        // Predicated region
        $region25: #{basic_encoder_block.1} parent=11 // pred_check
          %p244 = pneg %p126
        $region26: #{basic_encoder_block.1} parent=11 // pred_check_branch
          %246 = sbr.rel (%p244) target = $region28
        $region27: #{basic_encoder_block.1} parent=11 // pred_region
          _
        $region28: #{basic_encoder_block.1} parent=11 // pred_fallthru
          _
        // Predicated region
        $region29: #{basic_encoder_block.1} parent=11 // pred_check
          %p247 = pneg %p147
        $region30: #{basic_encoder_block.1} parent=11 // pred_check_branch
          %249 = sbr.rel (%p247) target = $region32
        $region31: #{basic_encoder_block.1} parent=11 // pred_region
          _
        $region32: #{basic_encoder_block.1} parent=11 // pred_fallthru
          _
        // Predicated region
        $region33: #{basic_encoder_block.1} parent=11 // pred_check
          %p250 = pneg %p168
        $region34: #{basic_encoder_block.1} parent=11 // pred_check_branch
          %252 = sbr.rel (%p250) target = $region36
        $region35: #{basic_encoder_block.1} parent=11 // pred_region
          %s254 = ssub.s32 4096, 4096
          %255 = vsyncadd [#allocation3], %s254
          %s256 = sshll.u32 [#allocation2], 4
          %s257 = int_to_ptr.vmem [resolvable:$true] %s256
          %262 = dma.hbm_to_vmem [thread:$0]  %s6, 4096, %s257, [#allocation3], 128, 128, 8
        $region36: #{basic_encoder_block.1} parent=11 // pred_fallthru
          _
      $region12: #{basic_encoder_block.1} parent=5 // pred_fallthru
        _
      %p263 = scmp.lt.s32.totalorder %s16, 2
      // Predicated region
      $region37: #{basic_encoder_block.1} parent=5 // pred_check
        %p264 = pneg %p263
      $region38: #{basic_encoder_block.1} parent=5 // pred_check_branch
        %266 = sbr.rel (%p264) target = $region40
      $region39: #{basic_encoder_block.1} parent=5 // pred_region
        // Predicated region
        $region41: #{basic_encoder_block.1} parent=39 // pred_check
          %p267 = pneg %p36
        $region42: #{basic_encoder_block.1} parent=39 // pred_check_branch
          %269 = sbr.rel (%p267) target = $region44
        $region43: #{basic_encoder_block.1} parent=39 // pred_region
          %p270 = scmp.lt.s32.totalorder %s16, 1
          %s271 = scalar_select %p270, %s16, 1
          %s272 = smul.addr %s271, 2
          %s273 = smul.addr %s272, 4
          %s274 = scalar_lea.vmem %s0, %s273
        $region44: #{basic_encoder_block.1} parent=39 // pred_fallthru
          _
      $region40: #{basic_encoder_block.1} parent=5 // pred_fallthru
        _
      %p275 = scmp.le.s32.totalorder 1, %s16
      %p276 = scmp.lt.s32.totalorder %s16, 3
      %p277 = pnand %p275, %p276
      %p278 = pneg %p277
      // Predicated region
      $region45: #{basic_encoder_block.1} parent=5 // pred_check
        _
      $region46: #{basic_encoder_block.1} parent=5 // pred_check_branch
        %280 = sbr.rel (%p277) target = $region48
      $region47: #{basic_encoder_block.1} parent=5 // pred_region
        %s281 = ssub.s32 %s16, 1
        // Predicated region
        $region49: #{basic_encoder_block.1} parent=47 // pred_check
          %p282 = pneg %p168
        $region50: #{basic_encoder_block.1} parent=47 // pred_check_branch
          %284 = sbr.rel (%p282) target = $region52
        $region51: #{basic_encoder_block.1} parent=47 // pred_region
          %285 = dma.done [#allocation3], 4096
        $region52: #{basic_encoder_block.1} parent=47 // pred_fallthru
          _
        %p286 = scmp.lt.s32.totalorder %s21, 1
        %s287 = scalar_select %p286, %s21, 1
        %s288 = smul.addr %s287, 2
        %s289 = smul.addr %s288, 4
        %s290 = scalar_lea.vmem %s0, %s289
        %p291 = pneg %p42
        %p292 = pneg %p39
        %p293 = pneg %p63
        %p294 = pneg %p60
        %p295 = pneg %p84
        %p296 = pneg %p81
        %p297 = pneg %p105
        %p298 = pneg %p102
        %p299 = pneg %p126
        %p300 = pneg %p123
        %p301 = pneg %p147
        %p302 = pneg %p144
        %p303 = pneg %p168
        %p304 = pneg %p165
        %p305 = pneg %p194
        %p306 = pneg %p191
        %p307 = scmp.lt.s32.totalorder %s21, 1
        %s308 = scalar_select %p307, %s21, 1
        %s309 = smul.addr %s308, 4
        %s310 = smul.addr %s309, 8
        %s311 = scalar_lea.vmem %s7, %s310
        %p312 = pneg %p220
        %p313 = pneg %p217
        %p314 = scmp.lt.s32.totalorder %s21, 1
        %s315 = scalar_select %p314, %s21, 1
        %s316 = smul.addr %s315, 2
        %s317 = smul.addr %s316, 8
        %s318 = scalar_lea.vmem %s8, %s317
        %p319 = scmp.lt.s32.totalorder %s21, 1
        %s320 = scalar_select %p319, %s21, 1
        %s321 = smul.addr %s320, 2
        %s322 = smul.addr %s321, 4
        %s323 = scalar_lea.vmem %s0, %s322
        %p324 = scmp.lt.s32.totalorder %s21, 1
        %s325 = scalar_select %p324, %s21, 1
        %s326 = smul.addr %s325, 4
        %s327 = smul.addr %s326, 8
        %s328 = scalar_lea.vmem %s7, %s327
        %p329 = scmp.lt.s32.totalorder %s21, 1
        %s330 = scalar_select %p329, %s21, 1
        %s331 = smul.addr %s330, 2
        %s332 = smul.addr %s331, 8
        %s333 = scalar_lea.vmem %s8, %s332
        %v334 = vld [vmem:[%s5] sm:$0xff]
        %v335 = vld [vmem:[%s5 + $0x8] sm:$0xff]
        %v336 = vld [vmem:[%s5 + $0x10] sm:$0xff]
        %v337 = vld [vmem:[%s5 + $0x18] sm:$0xff]
        %v338 = vld [vmem:[%s5 + $0x20] sm:$0xff]
        %v339 = vld [vmem:[%s5 + $0x28] sm:$0xff]
        %v340 = vld [vmem:[%s5 + $0x30] sm:$0xff]
        %v341 = vld [vmem:[%s5 + $0x38] sm:$0xff]
        %v342 = vld [vmem:[%s5 + $0x40] sm:$0xff]
        %v343 = vld [vmem:[%s5 + $0x48] sm:$0xff]
        %v344 = vld [vmem:[%s5 + $0x50] sm:$0xff]
        %v345 = vld [vmem:[%s5 + $0x58] sm:$0xff]
        %v346 = vld [vmem:[%s5 + $0x60] sm:$0xff]
        %v347 = vld [vmem:[%s5 + $0x68] sm:$0xff]
        %v348 = vld [vmem:[%s5 + $0x70] sm:$0xff]
        %v349 = vld [vmem:[%s5 + $0x78] sm:$0xff]
        %v350 = vld [vmem:[%s5 + $0x80] sm:$0xff]
        %v351 = vld [vmem:[%s5 + $0x88] sm:$0xff]
        %v352 = vld [vmem:[%s5 + $0x90] sm:$0xff]
        %v353 = vld [vmem:[%s5 + $0x98] sm:$0xff]
        %v354 = vld [vmem:[%s5 + $0xa0] sm:$0xff]
        %v355 = vld [vmem:[%s5 + $0xa8] sm:$0xff]
        %v356 = vld [vmem:[%s5 + $0xb0] sm:$0xff]
        %v357 = vld [vmem:[%s5 + $0xb8] sm:$0xff]
        %v358 = vld [vmem:[%s5 + $0xc0] sm:$0xff]
        %v359 = vld [vmem:[%s5 + $0xc8] sm:$0xff]
        %v360 = vld [vmem:[%s5 + $0xd0] sm:$0xff]
        %v361 = vld [vmem:[%s5 + $0xd8] sm:$0xff]
        %v362 = vld [vmem:[%s5 + $0xe0] sm:$0xff]
        %v363 = vld [vmem:[%s5 + $0xe8] sm:$0xff]
        %v364 = vld [vmem:[%s5 + $0xf0] sm:$0xff]
        %v365 = vld [vmem:[%s5 + $0xf8] sm:$0xff]
        %v366 = vld [vmem:[%s5 + $0x100] sm:$0xff]
        %v367 = vld [vmem:[%s5 + $0x108] sm:$0xff]
        %v368 = vld [vmem:[%s5 + $0x110] sm:$0xff]
        %v369 = vld [vmem:[%s5 + $0x118] sm:$0xff]
        %v370 = vld [vmem:[%s5 + $0x120] sm:$0xff]
        %v371 = vld [vmem:[%s5 + $0x128] sm:$0xff]
        %v372 = vld [vmem:[%s5 + $0x130] sm:$0xff]
        %v373 = vld [vmem:[%s5 + $0x138] sm:$0xff]
        %v374 = vld [vmem:[%s5 + $0x140] sm:$0xff]
        %v375 = vld [vmem:[%s5 + $0x148] sm:$0xff]
        %v376 = vld [vmem:[%s5 + $0x150] sm:$0xff]
        %v377 = vld [vmem:[%s5 + $0x158] sm:$0xff]
        %v378 = vld [vmem:[%s5 + $0x160] sm:$0xff]
        %v379 = vld [vmem:[%s5 + $0x168] sm:$0xff]
        %v380 = vld [vmem:[%s5 + $0x170] sm:$0xff]
        %v381 = vld [vmem:[%s5 + $0x178] sm:$0xff]
        %v382 = vld [vmem:[%s5 + $0x180] sm:$0xff]
        %v383 = vld [vmem:[%s5 + $0x188] sm:$0xff]
        %v384 = vld [vmem:[%s5 + $0x190] sm:$0xff]
        %v385 = vld [vmem:[%s5 + $0x198] sm:$0xff]
        %v386 = vld [vmem:[%s5 + $0x1a0] sm:$0xff]
        %v387 = vld [vmem:[%s5 + $0x1a8] sm:$0xff]
        %v388 = vld [vmem:[%s5 + $0x1b0] sm:$0xff]
        %v389 = vld [vmem:[%s5 + $0x1b8] sm:$0xff]
        %v390 = vld [vmem:[%s5 + $0x1c0] sm:$0xff]
        %v391 = vld [vmem:[%s5 + $0x1c8] sm:$0xff]
        %v392 = vld [vmem:[%s5 + $0x1d0] sm:$0xff]
        %v393 = vld [vmem:[%s5 + $0x1d8] sm:$0xff]
        %v394 = vld [vmem:[%s5 + $0x1e0] sm:$0xff]
        %v395 = vld [vmem:[%s5 + $0x1e8] sm:$0xff]
        %v396 = vld [vmem:[%s5 + $0x1f0] sm:$0xff]
        %v397 = vld [vmem:[%s5 + $0x1f8] sm:$0xff]
        %v398 = vld [vmem:[#allocation2] sm:$0xff]
        %v399 = vld [vmem:[#allocation2 + $0x8] sm:$0xff]
        %v400 = vld [vmem:[#allocation2 + $0x10] sm:$0xff]
        %v401 = vld [vmem:[#allocation2 + $0x18] sm:$0xff]
        %v402 = vld [vmem:[#allocation2 + $0x20] sm:$0xff]
        %v403 = vld [vmem:[#allocation2 + $0x28] sm:$0xff]
        %v404 = vld [vmem:[#allocation2 + $0x30] sm:$0xff]
        %v405 = vld [vmem:[#allocation2 + $0x38] sm:$0xff]
        %v406 = vld [vmem:[#allocation2 + $0x40] sm:$0xff]
        %v407 = vld [vmem:[#allocation2 + $0x48] sm:$0xff]
        %v408 = vld [vmem:[#allocation2 + $0x50] sm:$0xff]
        %v409 = vld [vmem:[#allocation2 + $0x58] sm:$0xff]
        %v410 = vld [vmem:[#allocation2 + $0x60] sm:$0xff]
        %v411 = vld [vmem:[#allocation2 + $0x68] sm:$0xff]
        %v412 = vld [vmem:[#allocation2 + $0x70] sm:$0xff]
        %v413 = vld [vmem:[#allocation2 + $0x78] sm:$0xff]
        %v414 = vld [vmem:[#allocation2 + $0x80] sm:$0xff]
        %v415 = vld [vmem:[#allocation2 + $0x88] sm:$0xff]
        %v416 = vld [vmem:[#allocation2 + $0x90] sm:$0xff]
        %v417 = vld [vmem:[#allocation2 + $0x98] sm:$0xff]
        %v418 = vld [vmem:[#allocation2 + $0xa0] sm:$0xff]
        %v419 = vld [vmem:[#allocation2 + $0xa8] sm:$0xff]
        %v420 = vld [vmem:[#allocation2 + $0xb0] sm:$0xff]
        %v421 = vld [vmem:[#allocation2 + $0xb8] sm:$0xff]
        %v422 = vld [vmem:[#allocation2 + $0xc0] sm:$0xff]
        %v423 = vld [vmem:[#allocation2 + $0xc8] sm:$0xff]
        %v424 = vld [vmem:[#allocation2 + $0xd0] sm:$0xff]
        %v425 = vld [vmem:[#allocation2 + $0xd8] sm:$0xff]
        %v426 = vld [vmem:[#allocation2 + $0xe0] sm:$0xff]
        %v427 = vld [vmem:[#allocation2 + $0xe8] sm:$0xff]
        %v428 = vld [vmem:[#allocation2 + $0xf0] sm:$0xff]
        %v429 = vld [vmem:[#allocation2 + $0xf8] sm:$0xff]
        %v430 = vld [vmem:[%s323] sm:$0xff]
        %v431 = vld [vmem:[%s1] sm:$0xff]
        %v432 = vld [vmem:[%s1 + $0x8] sm:$0xff]
        %v434 = vcombine.high %v430, %v430
        %436 = vrot.lane.b32.xlu0 %v430, 127
        %v437 = vpop.permute.xlu0 %436
        %438 = vrot.lane.b32.xlu0 %v434, 127
        %v439 = vpop.permute.xlu0 %438
        %v440 = vlaneseq
        %v441 = vand.u32 %v440, 127
        %vm442 = vcmp.lt.s32.totalorder %v441, 127
        %v443 = vsel %vm442, %v437, %v439
        %v444 = vsel %vm442, %v439, %v437
        %s445 = scalar_lea.vmem %s1, 16
        %v446 = vld [vmem:[%s445] sm:$0xff]
        %v447 = vld [vmem:[%s445 + $0x8] sm:$0xff]
        %vm448 = vcmask 31744
        %v450 = vsel %vm448, %v446, 0
        %v453 = vsel %vm448, %v447, 0
        %vm455 = vcmask 1043456
        %v457 = vsel %vm455, %v443, 0
        %v460 = vsel %vm455, %v444, 0
        %462 = vmatprep.subr.mxu0 %v460
        %463 = vmatpush1.msra.mxu0 %v457
        %464 = vmatprep.subr.mxu0 0.0
        %465 = vmatpush1.msra.mxu0 0.0
        %466 = vmatprep.subr.mxu0 0.0
        %467 = vmatpush1.msra.mxu0 0.0
        %468 = vmatprep.subr.mxu0 0.0
        %469 = vmatpush1.msra.mxu0 0.0
        %470 = vmatprep.subr.mxu0 0.0
        %471 = vmatpush1.msra.mxu0 0.0
        %472 = vmatprep.subr.mxu0 0.0
        %473 = vmatpush1.msra.mxu0 0.0
        %474 = vmatprep.subr.mxu0 0.0
        %475 = vmatpush1.msra.mxu0 0.0
        %476 = vmatprep.subr.mxu0 0.0
        %477 = vmatpush1.msra.mxu0 0.0
        %478 = vmatprep.subr.mxu0 0.0
        %479 = vmatpush1.msra.mxu0 0.0
        %480 = vmatprep.subr.mxu0 0.0
        %481 = vmatpush1.msra.mxu0 0.0
        %482 = vmatprep.subr.mxu0 0.0
        %483 = vmatpush1.msra.mxu0 0.0
        %484 = vmatprep.subr.mxu0 0.0
        %485 = vmatpush1.msra.mxu0 0.0
        %486 = vmatprep.subr.mxu0 0.0
        %487 = vmatpush1.msra.mxu0 0.0
        %488 = vmatprep.subr.mxu0 0.0
        %489 = vmatpush1.msra.mxu0 0.0
        %490 = vmatprep.subr.mxu0 0.0
        %491 = vmatpush1.msra.mxu0 0.0
        %492 = vmatprep.subr.mxu0 0.0
        %493 = vmatpush1.msra.mxu0 0.0
        %494 = vmatprep.subr.mxu0 0.0
        %495 = vmatpush1.msra.mxu0 0.0
        %496 = vmatprep.subr.mxu0 0.0
        %497 = vmatpush1.msra.mxu0 0.0
        %498 = vmatprep.subr.mxu0 0.0
        %499 = vmatpush1.msra.mxu0 0.0
        %500 = vmatprep.subr.mxu0 0.0
        %501 = vmatpush1.msra.mxu0 0.0
        %502 = vmatprep.subr.mxu0 0.0
        %503 = vmatpush1.msra.mxu0 0.0
        %504 = vmatprep.subr.mxu0 0.0
        %505 = vmatpush1.msra.mxu0 0.0
        %506 = vmatprep.subr.mxu0 0.0
        %507 = vmatpush1.msra.mxu0 0.0
        %508 = vmatprep.subr.mxu0 0.0
        %509 = vmatpush1.msra.mxu0 0.0
        %510 = vmatprep.subr.mxu0 0.0
        %511 = vmatpush1.msra.mxu0 0.0
        %512 = vmatprep.subr.mxu0 0.0
        %513 = vmatpush1.msra.mxu0 0.0
        %514 = vmatprep.subr.mxu0 0.0
        %515 = vmatpush1.msra.mxu0 0.0
        %516 = vmatprep.subr.mxu0 0.0
        %517 = vmatpush1.msra.mxu0 0.0
        %518 = vmatprep.subr.mxu0 0.0
        %519 = vmatpush1.msra.mxu0 0.0
        %520 = vmatprep.subr.mxu0 0.0
        %521 = vmatpush1.msra.mxu0 0.0
        %522 = vmatprep.subr.mxu0 0.0
        %523 = vmatpush1.msra.mxu0 0.0
        %524 = vmatprep.subr.mxu0 0.0
        %525 = vmatpush1.msra.mxu0 0.0
        %526 = vmatprep.mubr.f32.mxu0 0.0
        %527 = vmatmul.mubr.f32.gmra.mrb[0].mxu0 %v450
        %v528 = vpop.f32.mrb[0].mxu0
        %v529 = vadd.f32 0.0, %v528
        %v530 = vpop.f32.mrb[0].mxu0
        %v531 = vadd.f32 0.0, %v530
        %532 = vmatprep.mubr.f32.mxu0 0.0
        %533 = vmatmul.mubr.f32.gmra.mrb[0].mxu0 %v453
        %v534 = vpop.f32.mrb[0].mxu0
        %v535 = vadd.f32 0.0, %v534
        %v536 = vpop.f32.mrb[0].mxu0
        %v537 = vadd.f32 0.0, %v536
        %538 = vdwg.mxu0
        %v540 = vsel %vm448, %v431, 0
        %v543 = vsel %vm448, %v432, 0
        %v545 = vsel %vm455, %v430, 0
        %v547 = vsel %vm455, %v434, 0
        %549 = vmatprep.subr.mxu0 %v547
        %550 = vmatpush1.msra.mxu0 %v545
        %551 = vmatprep.subr.mxu0 0.0
        %552 = vmatpush1.msra.mxu0 0.0
        %553 = vmatprep.subr.mxu0 0.0
        %554 = vmatpush1.msra.mxu0 0.0
        %555 = vmatprep.subr.mxu0 0.0
        %556 = vmatpush1.msra.mxu0 0.0
        %557 = vmatprep.subr.mxu0 0.0
        %558 = vmatpush1.msra.mxu0 0.0
        %559 = vmatprep.subr.mxu0 0.0
        %560 = vmatpush1.msra.mxu0 0.0
        %561 = vmatprep.subr.mxu0 0.0
        %562 = vmatpush1.msra.mxu0 0.0
        %563 = vmatprep.subr.mxu0 0.0
        %564 = vmatpush1.msra.mxu0 0.0
        %565 = vmatprep.subr.mxu0 0.0
        %566 = vmatpush1.msra.mxu0 0.0
        %567 = vmatprep.subr.mxu0 0.0
        %568 = vmatpush1.msra.mxu0 0.0
        %569 = vmatprep.subr.mxu0 0.0
        %570 = vmatpush1.msra.mxu0 0.0
        %571 = vmatprep.subr.mxu0 0.0
        %572 = vmatpush1.msra.mxu0 0.0
        %573 = vmatprep.subr.mxu0 0.0
        %574 = vmatpush1.msra.mxu0 0.0
        %575 = vmatprep.subr.mxu0 0.0
        %576 = vmatpush1.msra.mxu0 0.0
        %577 = vmatprep.subr.mxu0 0.0
        %578 = vmatpush1.msra.mxu0 0.0
        %579 = vmatprep.subr.mxu0 0.0
        %580 = vmatpush1.msra.mxu0 0.0
        %581 = vmatprep.subr.mxu0 0.0
        %582 = vmatpush1.msra.mxu0 0.0
        %583 = vmatprep.subr.mxu0 0.0
        %584 = vmatpush1.msra.mxu0 0.0
        %585 = vmatprep.subr.mxu0 0.0
        %586 = vmatpush1.msra.mxu0 0.0
        %587 = vmatprep.subr.mxu0 0.0
        %588 = vmatpush1.msra.mxu0 0.0
        %589 = vmatprep.subr.mxu0 0.0
        %590 = vmatpush1.msra.mxu0 0.0
        %591 = vmatprep.subr.mxu0 0.0
        %592 = vmatpush1.msra.mxu0 0.0
        %593 = vmatprep.subr.mxu0 0.0
        %594 = vmatpush1.msra.mxu0 0.0
        %595 = vmatprep.subr.mxu0 0.0
        %596 = vmatpush1.msra.mxu0 0.0
        %597 = vmatprep.subr.mxu0 0.0
        %598 = vmatpush1.msra.mxu0 0.0
        %599 = vmatprep.subr.mxu0 0.0
        %600 = vmatpush1.msra.mxu0 0.0
        %601 = vmatprep.subr.mxu0 0.0
        %602 = vmatpush1.msra.mxu0 0.0
        %603 = vmatprep.subr.mxu0 0.0
        %604 = vmatpush1.msra.mxu0 0.0
        %605 = vmatprep.subr.mxu0 0.0
        %606 = vmatpush1.msra.mxu0 0.0
        %607 = vmatprep.subr.mxu0 0.0
        %608 = vmatpush1.msra.mxu0 0.0
        %609 = vmatprep.subr.mxu0 0.0
        %610 = vmatpush1.msra.mxu0 0.0
        %611 = vmatprep.subr.mxu0 0.0
        %612 = vmatpush1.msra.mxu0 0.0
        %613 = vmatprep.mubr.f32.mxu0 0.0
        %614 = vmatmul.mubr.f32.gmra.mrb[0].mxu0 %v540
        %v615 = vpop.f32.mrb[0].mxu0
        %v616 = vadd.f32 %v529, %v615
        %v617 = vpop.f32.mrb[0].mxu0
        %v618 = vadd.f32 %v531, %v617
        %619 = vmatprep.mubr.f32.mxu0 0.0
        %620 = vmatmul.mubr.f32.gmra.mrb[0].mxu0 %v543
        %v621 = vpop.f32.mrb[0].mxu0
        %v622 = vadd.f32 %v535, %v621
        %v623 = vpop.f32.mrb[0].mxu0
        %v624 = vadd.f32 %v537, %v623
        %625 = vdwg.mxu0
        %626 = vrot.lane.b32.xlu0 %v430, 126
        %v627 = vpop.permute.xlu0 %626
        %628 = vrot.lane.b32.xlu0 %v434, 126
        %v629 = vpop.permute.xlu0 %628
        %vm630 = vcmp.lt.s32.totalorder %v441, 126
        %v631 = vsel %vm630, %v627, %v629
        %v632 = vsel %vm630, %v629, %v627
        %s633 = scalar_lea.vmem %s1, 32
        %v634 = vld [vmem:[%s633] sm:$0xff]
        %v635 = vld [vmem:[%s633 + $0x8] sm:$0xff]
        %v637 = vsel %vm448, %v634, 0
        %v640 = vsel %vm448, %v635, 0
        %v643 = vsel %vm455, %v631, 0
        %v646 = vsel %vm455, %v632, 0
        %648 = vmatprep.subr.mxu0 %v646
        %649 = vmatpush1.msra.mxu0 %v643
        %650 = vmatprep.subr.mxu0 0.0
        %651 = vmatpush1.msra.mxu0 0.0
        %652 = vmatprep.subr.mxu0 0.0
        %653 = vmatpush1.msra.mxu0 0.0
        %654 = vmatprep.subr.mxu0 0.0
        %655 = vmatpush1.msra.mxu0 0.0
        %656 = vmatprep.subr.mxu0 0.0
        %657 = vmatpush1.msra.mxu0 0.0
        %658 = vmatprep.subr.mxu0 0.0
        %659 = vmatpush1.msra.mxu0 0.0
        %660 = vmatprep.subr.mxu0 0.0
        %661 = vmatpush1.msra.mxu0 0.0
        %662 = vmatprep.subr.mxu0 0.0
        %663 = vmatpush1.msra.mxu0 0.0
        %664 = vmatprep.subr.mxu0 0.0
        %665 = vmatpush1.msra.mxu0 0.0
        %666 = vmatprep.subr.mxu0 0.0
        %667 = vmatpush1.msra.mxu0 0.0
        %668 = vmatprep.subr.mxu0 0.0
        %669 = vmatpush1.msra.mxu0 0.0
        %670 = vmatprep.subr.mxu0 0.0
        %671 = vmatpush1.msra.mxu0 0.0
        %672 = vmatprep.subr.mxu0 0.0
        %673 = vmatpush1.msra.mxu0 0.0
        %674 = vmatprep.subr.mxu0 0.0
        %675 = vmatpush1.msra.mxu0 0.0
        %676 = vmatprep.subr.mxu0 0.0
        %677 = vmatpush1.msra.mxu0 0.0
        %678 = vmatprep.subr.mxu0 0.0
        %679 = vmatpush1.msra.mxu0 0.0
        %680 = vmatprep.subr.mxu0 0.0
        %681 = vmatpush1.msra.mxu0 0.0
        %682 = vmatprep.subr.mxu0 0.0
        %683 = vmatpush1.msra.mxu0 0.0
        %684 = vmatprep.subr.mxu0 0.0
        %685 = vmatpush1.msra.mxu0 0.0
        %686 = vmatprep.subr.mxu0 0.0
        %687 = vmatpush1.msra.mxu0 0.0
        %688 = vmatprep.subr.mxu0 0.0
        %689 = vmatpush1.msra.mxu0 0.0
        %690 = vmatprep.subr.mxu0 0.0
        %691 = vmatpush1.msra.mxu0 0.0
        %692 = vmatprep.subr.mxu0 0.0
        %693 = vmatpush1.msra.mxu0 0.0
        %694 = vmatprep.subr.mxu0 0.0
        %695 = vmatpush1.msra.mxu0 0.0
        %696 = vmatprep.subr.mxu0 0.0
        %697 = vmatpush1.msra.mxu0 0.0
        %698 = vmatprep.subr.mxu0 0.0
        %699 = vmatpush1.msra.mxu0 0.0
        %700 = vmatprep.subr.mxu0 0.0
        %701 = vmatpush1.msra.mxu0 0.0
        %702 = vmatprep.subr.mxu0 0.0
        %703 = vmatpush1.msra.mxu0 0.0
        %704 = vmatprep.subr.mxu0 0.0
        %705 = vmatpush1.msra.mxu0 0.0
        %706 = vmatprep.subr.mxu0 0.0
        %707 = vmatpush1.msra.mxu0 0.0
        %708 = vmatprep.subr.mxu0 0.0
        %709 = vmatpush1.msra.mxu0 0.0
        %710 = vmatprep.subr.mxu0 0.0
        %711 = vmatpush1.msra.mxu0 0.0
        %712 = vmatprep.mubr.f32.mxu0 0.0
        %713 = vmatmul.mubr.f32.gmra.mrb[0].mxu0 %v637
        %v714 = vpop.f32.mrb[0].mxu0
        %v715 = vadd.f32 0.0, %v714
        %v716 = vpop.f32.mrb[0].mxu0
        %v717 = vadd.f32 0.0, %v716
        %718 = vmatprep.mubr.f32.mxu0 0.0
        %719 = vmatmul.mubr.f32.gmra.mrb[0].mxu0 %v640
        %v720 = vpop.f32.mrb[0].mxu0
        %v721 = vadd.f32 0.0, %v720
        %v722 = vpop.f32.mrb[0].mxu0
        %v723 = vadd.f32 0.0, %v722
        %724 = vdwg.mxu0
        %v725 = vadd.f32 %v616, %v715
        %v726 = vadd.f32 %v618, %v717
        %v727 = vadd.f32 %v622, %v721
        %v728 = vadd.f32 %v624, %v723
        %729 = vrot.lane.b32.xlu0 %v430, 112
        %v730 = vpop.permute.xlu0 %729
        %731 = vrot.lane.b32.xlu0 %v434, 112
        %v732 = vpop.permute.xlu0 %731
        %vm733 = vcmp.lt.s32.totalorder %v441, 112
        %v734 = vsel %vm733, %v730, %v732
        %v735 = vsel %vm733, %v732, %v730
        %s736 = scalar_lea.vmem %s1, 48
        %v737 = vld [vmem:[%s736] sm:$0xff]
        %v738 = vld [vmem:[%s736 + $0x8] sm:$0xff]
        %v740 = vsel %vm448, %v737, 0
        %v743 = vsel %vm448, %v738, 0
        %v746 = vsel %vm455, %v734, 0
        %v749 = vsel %vm455, %v735, 0
        %751 = vmatprep.subr.mxu0 %v749
        %752 = vmatpush1.msra.mxu0 %v746
        %753 = vmatprep.subr.mxu0 0.0
        %754 = vmatpush1.msra.mxu0 0.0
        %755 = vmatprep.subr.mxu0 0.0
        %756 = vmatpush1.msra.mxu0 0.0
        %757 = vmatprep.subr.mxu0 0.0
        %758 = vmatpush1.msra.mxu0 0.0
        %759 = vmatprep.subr.mxu0 0.0
        %760 = vmatpush1.msra.mxu0 0.0
        %761 = vmatprep.subr.mxu0 0.0
        %762 = vmatpush1.msra.mxu0 0.0
        %763 = vmatprep.subr.mxu0 0.0
        %764 = vmatpush1.msra.mxu0 0.0
        %765 = vmatprep.subr.mxu0 0.0
        %766 = vmatpush1.msra.mxu0 0.0
        %767 = vmatprep.subr.mxu0 0.0
        %768 = vmatpush1.msra.mxu0 0.0
        %769 = vmatprep.subr.mxu0 0.0
        %770 = vmatpush1.msra.mxu0 0.0
        %771 = vmatprep.subr.mxu0 0.0
        %772 = vmatpush1.msra.mxu0 0.0
        %773 = vmatprep.subr.mxu0 0.0
        %774 = vmatpush1.msra.mxu0 0.0
        %775 = vmatprep.subr.mxu0 0.0
        %776 = vmatpush1.msra.mxu0 0.0
        %777 = vmatprep.subr.mxu0 0.0
        %778 = vmatpush1.msra.mxu0 0.0
        %779 = vmatprep.subr.mxu0 0.0
        %780 = vmatpush1.msra.mxu0 0.0
        %781 = vmatprep.subr.mxu0 0.0
        %782 = vmatpush1.msra.mxu0 0.0
        %783 = vmatprep.subr.mxu0 0.0
        %784 = vmatpush1.msra.mxu0 0.0
        %785 = vmatprep.subr.mxu0 0.0
        %786 = vmatpush1.msra.mxu0 0.0
        %787 = vmatprep.subr.mxu0 0.0
        %788 = vmatpush1.msra.mxu0 0.0
        %789 = vmatprep.subr.mxu0 0.0
        %790 = vmatpush1.msra.mxu0 0.0
        %791 = vmatprep.subr.mxu0 0.0
        %792 = vmatpush1.msra.mxu0 0.0
        %793 = vmatprep.subr.mxu0 0.0
        %794 = vmatpush1.msra.mxu0 0.0
        %795 = vmatprep.subr.mxu0 0.0
        %796 = vmatpush1.msra.mxu0 0.0
        %797 = vmatprep.subr.mxu0 0.0
        %798 = vmatpush1.msra.mxu0 0.0
        %799 = vmatprep.subr.mxu0 0.0
        %800 = vmatpush1.msra.mxu0 0.0
        %801 = vmatprep.subr.mxu0 0.0
        %802 = vmatpush1.msra.mxu0 0.0
        %803 = vmatprep.subr.mxu0 0.0
        %804 = vmatpush1.msra.mxu0 0.0
        %805 = vmatprep.subr.mxu0 0.0
        %806 = vmatpush1.msra.mxu0 0.0
        %807 = vmatprep.subr.mxu0 0.0
        %808 = vmatpush1.msra.mxu0 0.0
        %809 = vmatprep.subr.mxu0 0.0
        %810 = vmatpush1.msra.mxu0 0.0
        %811 = vmatprep.subr.mxu0 0.0
        %812 = vmatpush1.msra.mxu0 0.0
        %813 = vmatprep.subr.mxu0 0.0
        %814 = vmatpush1.msra.mxu0 0.0
        %815 = vmatprep.mubr.f32.mxu0 0.0
        %816 = vmatmul.mubr.f32.gmra.mrb[0].mxu0 %v740
        %v817 = vpop.f32.mrb[0].mxu0
        %v818 = vadd.f32 0.0, %v817
        %v819 = vpop.f32.mrb[0].mxu0
        %v820 = vadd.f32 0.0, %v819
        %821 = vmatprep.mubr.f32.mxu0 0.0
        %822 = vmatmul.mubr.f32.gmra.mrb[0].mxu0 %v743
        %v823 = vpop.f32.mrb[0].mxu0
        %v824 = vadd.f32 0.0, %v823
        %v825 = vpop.f32.mrb[0].mxu0
        %v826 = vadd.f32 0.0, %v825
        %827 = vdwg.mxu0
        %v828 = vadd.f32 %v725, %v818
        %v829 = vadd.f32 %v726, %v820
        %v830 = vadd.f32 %v727, %v824
        %v831 = vadd.f32 %v728, %v826
        %832 = vrot.lane.b32.xlu0 %v430, 111
        %v833 = vpop.permute.xlu0 %832
        %834 = vrot.lane.b32.xlu0 %v434, 111
        %v835 = vpop.permute.xlu0 %834
        %vm836 = vcmp.lt.s32.totalorder %v441, 111
        %v837 = vsel %vm836, %v833, %v835
        %v838 = vsel %vm836, %v835, %v833
        %s839 = scalar_lea.vmem %s1, 64
        %v840 = vld [vmem:[%s839] sm:$0xff]
        %v841 = vld [vmem:[%s839 + $0x8] sm:$0xff]
        %v843 = vsel %vm448, %v840, 0
        %v846 = vsel %vm448, %v841, 0
        %v849 = vsel %vm455, %v837, 0
        %v852 = vsel %vm455, %v838, 0
        %854 = vmatprep.subr.mxu0 %v852
        %855 = vmatpush1.msra.mxu0 %v849
        %856 = vmatprep.subr.mxu0 0.0
        %857 = vmatpush1.msra.mxu0 0.0
        %858 = vmatprep.subr.mxu0 0.0
        %859 = vmatpush1.msra.mxu0 0.0
        %860 = vmatprep.subr.mxu0 0.0
        %861 = vmatpush1.msra.mxu0 0.0
        %862 = vmatprep.subr.mxu0 0.0
        %863 = vmatpush1.msra.mxu0 0.0
        %864 = vmatprep.subr.mxu0 0.0
        %865 = vmatpush1.msra.mxu0 0.0
        %866 = vmatprep.subr.mxu0 0.0
        %867 = vmatpush1.msra.mxu0 0.0
        %868 = vmatprep.subr.mxu0 0.0
        %869 = vmatpush1.msra.mxu0 0.0
        %870 = vmatprep.subr.mxu0 0.0
        %871 = vmatpush1.msra.mxu0 0.0
        %872 = vmatprep.subr.mxu0 0.0
        %873 = vmatpush1.msra.mxu0 0.0
        %874 = vmatprep.subr.mxu0 0.0
        %875 = vmatpush1.msra.mxu0 0.0
        %876 = vmatprep.subr.mxu0 0.0
        %877 = vmatpush1.msra.mxu0 0.0
        %878 = vmatprep.subr.mxu0 0.0
        %879 = vmatpush1.msra.mxu0 0.0
        %880 = vmatprep.subr.mxu0 0.0
        %881 = vmatpush1.msra.mxu0 0.0
        %882 = vmatprep.subr.mxu0 0.0
        %883 = vmatpush1.msra.mxu0 0.0
        %884 = vmatprep.subr.mxu0 0.0
        %885 = vmatpush1.msra.mxu0 0.0
        %886 = vmatprep.subr.mxu0 0.0
        %887 = vmatpush1.msra.mxu0 0.0
        %888 = vmatprep.subr.mxu0 0.0
        %889 = vmatpush1.msra.mxu0 0.0
        %890 = vmatprep.subr.mxu0 0.0
        %891 = vmatpush1.msra.mxu0 0.0
        %892 = vmatprep.subr.mxu0 0.0
        %893 = vmatpush1.msra.mxu0 0.0
        %894 = vmatprep.subr.mxu0 0.0
        %895 = vmatpush1.msra.mxu0 0.0
        %896 = vmatprep.subr.mxu0 0.0
        %897 = vmatpush1.msra.mxu0 0.0
        %898 = vmatprep.subr.mxu0 0.0
        %899 = vmatpush1.msra.mxu0 0.0
        %900 = vmatprep.subr.mxu0 0.0
        %901 = vmatpush1.msra.mxu0 0.0
        %902 = vmatprep.subr.mxu0 0.0
        %903 = vmatpush1.msra.mxu0 0.0
        %904 = vmatprep.subr.mxu0 0.0
        %905 = vmatpush1.msra.mxu0 0.0
        %906 = vmatprep.subr.mxu0 0.0
        %907 = vmatpush1.msra.mxu0 0.0
        %908 = vmatprep.subr.mxu0 0.0
        %909 = vmatpush1.msra.mxu0 0.0
        %910 = vmatprep.subr.mxu0 0.0
        %911 = vmatpush1.msra.mxu0 0.0
        %912 = vmatprep.subr.mxu0 0.0
        %913 = vmatpush1.msra.mxu0 0.0
        %914 = vmatprep.subr.mxu0 0.0
        %915 = vmatpush1.msra.mxu0 0.0
        %916 = vmatprep.subr.mxu0 0.0
        %917 = vmatpush1.msra.mxu0 0.0
        %918 = vmatprep.mubr.f32.mxu0 0.0
        %919 = vmatmul.mubr.f32.gmra.mrb[0].mxu0 %v843
        %v920 = vpop.f32.mrb[0].mxu0
        %v921 = vadd.f32 0.0, %v920
        %v922 = vpop.f32.mrb[0].mxu0
        %v923 = vadd.f32 0.0, %v922
        %924 = vmatprep.mubr.f32.mxu0 0.0
        %925 = vmatmul.mubr.f32.gmra.mrb[0].mxu0 %v846
        %v926 = vpop.f32.mrb[0].mxu0
        %v927 = vadd.f32 0.0, %v926
        %v928 = vpop.f32.mrb[0].mxu0
        %v929 = vadd.f32 0.0, %v928
        %930 = vdwg.mxu0
        %v931 = vadd.f32 %v828, %v921
        %v932 = vadd.f32 %v829, %v923
        %v933 = vadd.f32 %v830, %v927
        %v934 = vadd.f32 %v831, %v929
        %935 = vrot.lane.b32.xlu0 %v430, 110
        %v936 = vpop.permute.xlu0 %935
        %937 = vrot.lane.b32.xlu0 %v434, 110
        %v938 = vpop.permute.xlu0 %937
        %vm939 = vcmp.lt.s32.totalorder %v441, 110
        %v940 = vsel %vm939, %v936, %v938
        %v941 = vsel %vm939, %v938, %v936
        %s942 = scalar_lea.vmem %s1, 80
        %v943 = vld [vmem:[%s942] sm:$0xff]
        %v944 = vld [vmem:[%s942 + $0x8] sm:$0xff]
        %v946 = vsel %vm448, %v943, 0
        %v949 = vsel %vm448, %v944, 0
        %v952 = vsel %vm455, %v940, 0
        %v955 = vsel %vm455, %v941, 0
        %957 = vmatprep.subr.mxu0 %v955
        %958 = vmatpush1.msra.mxu0 %v952
        %959 = vmatprep.subr.mxu0 0.0
        %960 = vmatpush1.msra.mxu0 0.0
        %961 = vmatprep.subr.mxu0 0.0
        %962 = vmatpush1.msra.mxu0 0.0
        %963 = vmatprep.subr.mxu0 0.0
        %964 = vmatpush1.msra.mxu0 0.0
        %965 = vmatprep.subr.mxu0 0.0
        %966 = vmatpush1.msra.mxu0 0.0
        %967 = vmatprep.subr.mxu0 0.0
        %968 = vmatpush1.msra.mxu0 0.0
        %969 = vmatprep.subr.mxu0 0.0
        %970 = vmatpush1.msra.mxu0 0.0
        %971 = vmatprep.subr.mxu0 0.0
        %972 = vmatpush1.msra.mxu0 0.0
        %973 = vmatprep.subr.mxu0 0.0
        %974 = vmatpush1.msra.mxu0 0.0
        %975 = vmatprep.subr.mxu0 0.0
        %976 = vmatpush1.msra.mxu0 0.0
        %977 = vmatprep.subr.mxu0 0.0
        %978 = vmatpush1.msra.mxu0 0.0
        %979 = vmatprep.subr.mxu0 0.0
        %980 = vmatpush1.msra.mxu0 0.0
        %981 = vmatprep.subr.mxu0 0.0
        %982 = vmatpush1.msra.mxu0 0.0
        %983 = vmatprep.subr.mxu0 0.0
        %984 = vmatpush1.msra.mxu0 0.0
        %985 = vmatprep.subr.mxu0 0.0
        %986 = vmatpush1.msra.mxu0 0.0
        %987 = vmatprep.subr.mxu0 0.0
        %988 = vmatpush1.msra.mxu0 0.0
        %989 = vmatprep.subr.mxu0 0.0
        %990 = vmatpush1.msra.mxu0 0.0
        %991 = vmatprep.subr.mxu0 0.0
        %992 = vmatpush1.msra.mxu0 0.0
        %993 = vmatprep.subr.mxu0 0.0
        %994 = vmatpush1.msra.mxu0 0.0
        %995 = vmatprep.subr.mxu0 0.0
        %996 = vmatpush1.msra.mxu0 0.0
        %997 = vmatprep.subr.mxu0 0.0
        %998 = vmatpush1.msra.mxu0 0.0
        %999 = vmatprep.subr.mxu0 0.0
        %1000 = vmatpush1.msra.mxu0 0.0
        %1001 = vmatprep.subr.mxu0 0.0
        %1002 = vmatpush1.msra.mxu0 0.0
        %1003 = vmatprep.subr.mxu0 0.0
        %1004 = vmatpush1.msra.mxu0 0.0
        %1005 = vmatprep.subr.mxu0 0.0
        %1006 = vmatpush1.msra.mxu0 0.0
        %1007 = vmatprep.subr.mxu0 0.0
        %1008 = vmatpush1.msra.mxu0 0.0
        %1009 = vmatprep.subr.mxu0 0.0
        %1010 = vmatpush1.msra.mxu0 0.0
        %1011 = vmatprep.subr.mxu0 0.0
        %1012 = vmatpush1.msra.mxu0 0.0
        %1013 = vmatprep.subr.mxu0 0.0
        %1014 = vmatpush1.msra.mxu0 0.0
        %1015 = vmatprep.subr.mxu0 0.0
        %1016 = vmatpush1.msra.mxu0 0.0
        %1017 = vmatprep.subr.mxu0 0.0
        %1018 = vmatpush1.msra.mxu0 0.0
        %1019 = vmatprep.subr.mxu0 0.0
        %1020 = vmatpush1.msra.mxu0 0.0
        %1021 = vmatprep.mubr.f32.mxu0 0.0
        %1022 = vmatmul.mubr.f32.gmra.mrb[0].mxu0 %v946
        %v1023 = vpop.f32.mrb[0].mxu0
        %v1024 = vadd.f32 0.0, %v1023
        %v1025 = vpop.f32.mrb[0].mxu0
        %v1026 = vadd.f32 0.0, %v1025
        %1027 = vmatprep.mubr.f32.mxu0 0.0
        %1028 = vmatmul.mubr.f32.gmra.mrb[0].mxu0 %v949
        %v1029 = vpop.f32.mrb[0].mxu0
        %v1030 = vadd.f32 0.0, %v1029
        %v1031 = vpop.f32.mrb[0].mxu0
        %v1032 = vadd.f32 0.0, %v1031
        %1033 = vdwg.mxu0
        %v1034 = vadd.f32 %v931, %v1024
        %v1035 = vadd.f32 %v932, %v1026
        %v1036 = vadd.f32 %v933, %v1030
        %v1037 = vadd.f32 %v934, %v1032
        %1038 = vrot.lane.b32.xlu0 %v430, 96
        %v1039 = vpop.permute.xlu0 %1038
        %1040 = vrot.lane.b32.xlu0 %v434, 96
        %v1041 = vpop.permute.xlu0 %1040
        %vm1042 = vcmp.lt.s32.totalorder %v441, 96
        %v1043 = vsel %vm1042, %v1039, %v1041
        %v1044 = vsel %vm1042, %v1041, %v1039
        %s1045 = scalar_lea.vmem %s1, 96
        %v1046 = vld [vmem:[%s1045] sm:$0xff]
        %v1047 = vld [vmem:[%s1045 + $0x8] sm:$0xff]
        %v1049 = vsel %vm448, %v1046, 0
        %v1052 = vsel %vm448, %v1047, 0
        %v1055 = vsel %vm455, %v1043, 0
        %v1058 = vsel %vm455, %v1044, 0
        %1060 = vmatprep.subr.mxu0 %v1058
        %1061 = vmatpush1.msra.mxu0 %v1055
        %1062 = vmatprep.subr.mxu0 0.0
        %1063 = vmatpush1.msra.mxu0 0.0
        %1064 = vmatprep.subr.mxu0 0.0
        %1065 = vmatpush1.msra.mxu0 0.0
        %1066 = vmatprep.subr.mxu0 0.0
        %1067 = vmatpush1.msra.mxu0 0.0
        %1068 = vmatprep.subr.mxu0 0.0
        %1069 = vmatpush1.msra.mxu0 0.0
        %1070 = vmatprep.subr.mxu0 0.0
        %1071 = vmatpush1.msra.mxu0 0.0
        %1072 = vmatprep.subr.mxu0 0.0
        %1073 = vmatpush1.msra.mxu0 0.0
        %1074 = vmatprep.subr.mxu0 0.0
        %1075 = vmatpush1.msra.mxu0 0.0
        %1076 = vmatprep.subr.mxu0 0.0
        %1077 = vmatpush1.msra.mxu0 0.0
        %1078 = vmatprep.subr.mxu0 0.0
        %1079 = vmatpush1.msra.mxu0 0.0
        %1080 = vmatprep.subr.mxu0 0.0
        %1081 = vmatpush1.msra.mxu0 0.0
        %1082 = vmatprep.subr.mxu0 0.0
        %1083 = vmatpush1.msra.mxu0 0.0
        %1084 = vmatprep.subr.mxu0 0.0
        %1085 = vmatpush1.msra.mxu0 0.0
        %1086 = vmatprep.subr.mxu0 0.0
        %1087 = vmatpush1.msra.mxu0 0.0
        %1088 = vmatprep.subr.mxu0 0.0
        %1089 = vmatpush1.msra.mxu0 0.0
        %1090 = vmatprep.subr.mxu0 0.0
        %1091 = vmatpush1.msra.mxu0 0.0
        %1092 = vmatprep.subr.mxu0 0.0
        %1093 = vmatpush1.msra.mxu0 0.0
        %1094 = vmatprep.subr.mxu0 0.0
        %1095 = vmatpush1.msra.mxu0 0.0
        %1096 = vmatprep.subr.mxu0 0.0
        %1097 = vmatpush1.msra.mxu0 0.0
        %1098 = vmatprep.subr.mxu0 0.0
        %1099 = vmatpush1.msra.mxu0 0.0
        %1100 = vmatprep.subr.mxu0 0.0
        %1101 = vmatpush1.msra.mxu0 0.0
        %1102 = vmatprep.subr.mxu0 0.0
        %1103 = vmatpush1.msra.mxu0 0.0
        %1104 = vmatprep.subr.mxu0 0.0
        %1105 = vmatpush1.msra.mxu0 0.0
        %1106 = vmatprep.subr.mxu0 0.0
        %1107 = vmatpush1.msra.mxu0 0.0
        %1108 = vmatprep.subr.mxu0 0.0
        %1109 = vmatpush1.msra.mxu0 0.0
        %1110 = vmatprep.subr.mxu0 0.0
        %1111 = vmatpush1.msra.mxu0 0.0
        %1112 = vmatprep.subr.mxu0 0.0
        %1113 = vmatpush1.msra.mxu0 0.0
        %1114 = vmatprep.subr.mxu0 0.0
        %1115 = vmatpush1.msra.mxu0 0.0
        %1116 = vmatprep.subr.mxu0 0.0
        %1117 = vmatpush1.msra.mxu0 0.0
        %1118 = vmatprep.subr.mxu0 0.0
        %1119 = vmatpush1.msra.mxu0 0.0
        %1120 = vmatprep.subr.mxu0 0.0
        %1121 = vmatpush1.msra.mxu0 0.0
        %1122 = vmatprep.subr.mxu0 0.0
        %1123 = vmatpush1.msra.mxu0 0.0
        %1124 = vmatprep.mubr.f32.mxu0 0.0
        %1125 = vmatmul.mubr.f32.gmra.mrb[0].mxu0 %v1049
        %v1126 = vpop.f32.mrb[0].mxu0
        %v1127 = vadd.f32 0.0, %v1126
        %v1128 = vpop.f32.mrb[0].mxu0
        %v1129 = vadd.f32 0.0, %v1128
        %1130 = vmatprep.mubr.f32.mxu0 0.0
        %1131 = vmatmul.mubr.f32.gmra.mrb[0].mxu0 %v1052
        %v1132 = vpop.f32.mrb[0].mxu0
        %v1133 = vadd.f32 0.0, %v1132
        %v1134 = vpop.f32.mrb[0].mxu0
        %v1135 = vadd.f32 0.0, %v1134
        %1136 = vdwg.mxu0
        %v1137 = vadd.f32 %v1034, %v1127
        %v1138 = vadd.f32 %v1035, %v1129
        %v1139 = vadd.f32 %v1036, %v1133
        %v1140 = vadd.f32 %v1037, %v1135
        %1141 = vrot.lane.b32.xlu0 %v430, 95
        %v1142 = vpop.permute.xlu0 %1141
        %1143 = vrot.lane.b32.xlu0 %v434, 95
        %v1144 = vpop.permute.xlu0 %1143
        %vm1145 = vcmp.lt.s32.totalorder %v441, 95
        %v1146 = vsel %vm1145, %v1142, %v1144
        %v1147 = vsel %vm1145, %v1144, %v1142
        %s1148 = scalar_lea.vmem %s1, 112
        %v1149 = vld [vmem:[%s1148] sm:$0xff]
        %v1150 = vld [vmem:[%s1148 + $0x8] sm:$0xff]
        %v1152 = vsel %vm448, %v1149, 0
        %v1155 = vsel %vm448, %v1150, 0
        %v1158 = vsel %vm455, %v1146, 0
        %v1161 = vsel %vm455, %v1147, 0
        %1163 = vmatprep.subr.mxu0 %v1161
        %1164 = vmatpush1.msra.mxu0 %v1158
        %1165 = vmatprep.subr.mxu0 0.0
        %1166 = vmatpush1.msra.mxu0 0.0
        %1167 = vmatprep.subr.mxu0 0.0
        %1168 = vmatpush1.msra.mxu0 0.0
        %1169 = vmatprep.subr.mxu0 0.0
        %1170 = vmatpush1.msra.mxu0 0.0
        %1171 = vmatprep.subr.mxu0 0.0
        %1172 = vmatpush1.msra.mxu0 0.0
        %1173 = vmatprep.subr.mxu0 0.0
        %1174 = vmatpush1.msra.mxu0 0.0
        %1175 = vmatprep.subr.mxu0 0.0
        %1176 = vmatpush1.msra.mxu0 0.0
        %1177 = vmatprep.subr.mxu0 0.0
        %1178 = vmatpush1.msra.mxu0 0.0
        %1179 = vmatprep.subr.mxu0 0.0
        %1180 = vmatpush1.msra.mxu0 0.0
        %1181 = vmatprep.subr.mxu0 0.0
        %1182 = vmatpush1.msra.mxu0 0.0
        %1183 = vmatprep.subr.mxu0 0.0
        %1184 = vmatpush1.msra.mxu0 0.0
        %1185 = vmatprep.subr.mxu0 0.0
        %1186 = vmatpush1.msra.mxu0 0.0
        %1187 = vmatprep.subr.mxu0 0.0
        %1188 = vmatpush1.msra.mxu0 0.0
        %1189 = vmatprep.subr.mxu0 0.0
        %1190 = vmatpush1.msra.mxu0 0.0
        %1191 = vmatprep.subr.mxu0 0.0
        %1192 = vmatpush1.msra.mxu0 0.0
        %1193 = vmatprep.subr.mxu0 0.0
        %1194 = vmatpush1.msra.mxu0 0.0
        %1195 = vmatprep.subr.mxu0 0.0
        %1196 = vmatpush1.msra.mxu0 0.0
        %1197 = vmatprep.subr.mxu0 0.0
        %1198 = vmatpush1.msra.mxu0 0.0
        %1199 = vmatprep.subr.mxu0 0.0
        %1200 = vmatpush1.msra.mxu0 0.0
        %1201 = vmatprep.subr.mxu0 0.0
        %1202 = vmatpush1.msra.mxu0 0.0
        %1203 = vmatprep.subr.mxu0 0.0
        %1204 = vmatpush1.msra.mxu0 0.0
        %1205 = vmatprep.subr.mxu0 0.0
        %1206 = vmatpush1.msra.mxu0 0.0
        %1207 = vmatprep.subr.mxu0 0.0
        %1208 = vmatpush1.msra.mxu0 0.0
        %1209 = vmatprep.subr.mxu0 0.0
        %1210 = vmatpush1.msra.mxu0 0.0
        %1211 = vmatprep.subr.mxu0 0.0
        %1212 = vmatpush1.msra.mxu0 0.0
        %1213 = vmatprep.subr.mxu0 0.0
        %1214 = vmatpush1.msra.mxu0 0.0
        %1215 = vmatprep.subr.mxu0 0.0
        %1216 = vmatpush1.msra.mxu0 0.0
        %1217 = vmatprep.subr.mxu0 0.0
        %1218 = vmatpush1.msra.mxu0 0.0
        %1219 = vmatprep.subr.mxu0 0.0
        %1220 = vmatpush1.msra.mxu0 0.0
        %1221 = vmatprep.subr.mxu0 0.0
        %1222 = vmatpush1.msra.mxu0 0.0
        %1223 = vmatprep.subr.mxu0 0.0
        %1224 = vmatpush1.msra.mxu0 0.0
        %1225 = vmatprep.subr.mxu0 0.0
        %1226 = vmatpush1.msra.mxu0 0.0
        %1227 = vmatprep.mubr.f32.mxu0 0.0
        %1228 = vmatmul.mubr.f32.gmra.mrb[0].mxu0 %v1152
        %v1229 = vpop.f32.mrb[0].mxu0
        %v1230 = vadd.f32 0.0, %v1229
        %v1231 = vpop.f32.mrb[0].mxu0
        %v1232 = vadd.f32 0.0, %v1231
        %1233 = vmatprep.mubr.f32.mxu0 0.0
        %1234 = vmatmul.mubr.f32.gmra.mrb[0].mxu0 %v1155
        %v1235 = vpop.f32.mrb[0].mxu0
        %v1236 = vadd.f32 0.0, %v1235
        %v1237 = vpop.f32.mrb[0].mxu0
        %v1238 = vadd.f32 0.0, %v1237
        %1239 = vdwg.mxu0
        %v1240 = vadd.f32 %v1137, %v1230
        %v1241 = vadd.f32 %v1138, %v1232
        %v1242 = vadd.f32 %v1139, %v1236
        %v1243 = vadd.f32 %v1140, %v1238
        %1244 = vrot.lane.b32.xlu0 %v430, 94
        %v1245 = vpop.permute.xlu0 %1244
        %1246 = vrot.lane.b32.xlu0 %v434, 94
        %v1247 = vpop.permute.xlu0 %1246
        %vm1248 = vcmp.lt.s32.totalorder %v441, 94
        %v1249 = vsel %vm1248, %v1245, %v1247
        %v1250 = vsel %vm1248, %v1247, %v1245
        %s1251 = scalar_lea.vmem %s1, 128
        %v1252 = vld [vmem:[%s1251] sm:$0xff]
        %v1253 = vld [vmem:[%s1251 + $0x8] sm:$0xff]
        %v1255 = vsel %vm448, %v1252, 0
        %v1258 = vsel %vm448, %v1253, 0
        %v1261 = vsel %vm455, %v1249, 0
        %v1264 = vsel %vm455, %v1250, 0
        %1266 = vmatprep.subr.mxu0 %v1264
        %1267 = vmatpush1.msra.mxu0 %v1261
        %1268 = vmatprep.subr.mxu0 0.0
        %1269 = vmatpush1.msra.mxu0 0.0
        %1270 = vmatprep.subr.mxu0 0.0
        %1271 = vmatpush1.msra.mxu0 0.0
        %1272 = vmatprep.subr.mxu0 0.0
        %1273 = vmatpush1.msra.mxu0 0.0
        %1274 = vmatprep.subr.mxu0 0.0
        %1275 = vmatpush1.msra.mxu0 0.0
        %1276 = vmatprep.subr.mxu0 0.0
        %1277 = vmatpush1.msra.mxu0 0.0
        %1278 = vmatprep.subr.mxu0 0.0
        %1279 = vmatpush1.msra.mxu0 0.0
        %1280 = vmatprep.subr.mxu0 0.0
        %1281 = vmatpush1.msra.mxu0 0.0
        %1282 = vmatprep.subr.mxu0 0.0
        %1283 = vmatpush1.msra.mxu0 0.0
        %1284 = vmatprep.subr.mxu0 0.0
        %1285 = vmatpush1.msra.mxu0 0.0
        %1286 = vmatprep.subr.mxu0 0.0
        %1287 = vmatpush1.msra.mxu0 0.0
        %1288 = vmatprep.subr.mxu0 0.0
        %1289 = vmatpush1.msra.mxu0 0.0
        %1290 = vmatprep.subr.mxu0 0.0
        %1291 = vmatpush1.msra.mxu0 0.0
        %1292 = vmatprep.subr.mxu0 0.0
        %1293 = vmatpush1.msra.mxu0 0.0
        %1294 = vmatprep.subr.mxu0 0.0
        %1295 = vmatpush1.msra.mxu0 0.0
        %1296 = vmatprep.subr.mxu0 0.0
        %1297 = vmatpush1.msra.mxu0 0.0
        %1298 = vmatprep.subr.mxu0 0.0
        %1299 = vmatpush1.msra.mxu0 0.0
        %1300 = vmatprep.subr.mxu0 0.0
        %1301 = vmatpush1.msra.mxu0 0.0
        %1302 = vmatprep.subr.mxu0 0.0
        %1303 = vmatpush1.msra.mxu0 0.0
        %1304 = vmatprep.subr.mxu0 0.0
        %1305 = vmatpush1.msra.mxu0 0.0
        %1306 = vmatprep.subr.mxu0 0.0
        %1307 = vmatpush1.msra.mxu0 0.0
        %1308 = vmatprep.subr.mxu0 0.0
        %1309 = vmatpush1.msra.mxu0 0.0
        %1310 = vmatprep.subr.mxu0 0.0
        %1311 = vmatpush1.msra.mxu0 0.0
        %1312 = vmatprep.subr.mxu0 0.0
        %1313 = vmatpush1.msra.mxu0 0.0
        %1314 = vmatprep.subr.mxu0 0.0
        %1315 = vmatpush1.msra.mxu0 0.0
        %1316 = vmatprep.subr.mxu0 0.0
        %1317 = vmatpush1.msra.mxu0 0.0
        %1318 = vmatprep.subr.mxu0 0.0
        %1319 = vmatpush1.msra.mxu0 0.0
        %1320 = vmatprep.subr.mxu0 0.0
        %1321 = vmatpush1.msra.mxu0 0.0
        %1322 = vmatprep.subr.mxu0 0.0
        %1323 = vmatpush1.msra.mxu0 0.0
        %1324 = vmatprep.subr.mxu0 0.0
        %1325 = vmatpush1.msra.mxu0 0.0
        %1326 = vmatprep.subr.mxu0 0.0
        %1327 = vmatpush1.msra.mxu0 0.0
        %1328 = vmatprep.subr.mxu0 0.0
        %1329 = vmatpush1.msra.mxu0 0.0
        %1330 = vmatprep.mubr.f32.mxu0 0.0
        %1331 = vmatmul.mubr.f32.gmra.mrb[0].mxu0 %v1255
        %v1332 = vpop.f32.mrb[0].mxu0
        %v1333 = vadd.f32 0.0, %v1332
        %v1334 = vpop.f32.mrb[0].mxu0
        %v1335 = vadd.f32 0.0, %v1334
        %1336 = vmatprep.mubr.f32.mxu0 0.0
        %1337 = vmatmul.mubr.f32.gmra.mrb[0].mxu0 %v1258
        %v1338 = vpop.f32.mrb[0].mxu0
        %v1339 = vadd.f32 0.0, %v1338
        %v1340 = vpop.f32.mrb[0].mxu0
        %v1341 = vadd.f32 0.0, %v1340
        %1342 = vdwg.mxu0
        %v1343 = vadd.f32 %v1240, %v1333
        %v1344 = vadd.f32 %v1241, %v1335
        %v1345 = vadd.f32 %v1242, %v1339
        %v1346 = vadd.f32 %v1243, %v1341
        %v1347 = vld [vmem:[%s2] sm:$0xff]
        %v1348 = vld [vmem:[%s2 + $0x8] sm:$0xff]
        %1350 = vset.pattern.permute.xlu0 0
        %1351 = vperm.xlu0 %1350, %v1347
        %v1352 = vpop.permute.xlu0 %1351
        %1355 = vset.pattern.permute.xlu0 0
        %1356 = vperm.xlu0 %1355, %v1348
        %v1357 = vpop.permute.xlu0 %1356
        %v1359 = vadd.f32 %v1343, %v1352
        %v1360 = vadd.f32 %v1344, %v1352
        %v1361 = vadd.f32 %v1345, %v1357
        %v1362 = vadd.f32 %v1346, %v1357
        %v1363 = vmax.f32 %v1359, 0.0
        %v1364 = vmax.f32 %v1360, 0.0
        %v1365 = vmax.f32 %v1361, 0.0
        %v1366 = vmax.f32 %v1362, 0.0
        %v1367 = vld [vmem:[%s3] sm:$0xff]
        %v1368 = vld [vmem:[%s3 + $0x8] sm:$0xff]
        %1369 = vrot.lane.b32.xlu0 %v1363, 127
        %v1370 = vpop.permute.xlu0 %1369
        %1371 = vrot.lane.b32.xlu0 %v1365, 127
        %v1372 = vpop.permute.xlu0 %1371
        %1373 = vrot.lane.b32.xlu0 %v1364, 127
        %v1374 = vpop.permute.xlu0 %1373
        %1375 = vrot.lane.b32.xlu0 %v1366, 127
        %v1376 = vpop.permute.xlu0 %1375
        %v1377 = vsel %vm442, %v1370, %v1374
        %v1378 = vsel %vm442, %v1372, %v1376
        %v1379 = vsel %vm442, %v1374, %v1370
        %v1380 = vsel %vm442, %v1376, %v1372
        %s1381 = scalar_lea.vmem %s3, 16
        %v1382 = vld [vmem:[%s1381] sm:$0xff]
        %v1383 = vld [vmem:[%s1381 + $0x8] sm:$0xff]
        %vm1384 = vcmask 130048
        %v1386 = vsel %vm1384, %v1382, 0
        %v1389 = vsel %vm1384, %v1383, 0
        %1391 = vmatprep.subr.mxu0 %v1379
        %1392 = vmatpush1.msra.mxu0 %v1377
        %1393 = vmatprep.subr.mxu0 %v1380
        %1394 = vmatpush1.msra.mxu0 %v1378
        %1395 = vmatprep.subr.mxu0 0.0
        %1396 = vmatpush1.msra.mxu0 0.0
        %1397 = vmatprep.subr.mxu0 0.0
        %1398 = vmatpush1.msra.mxu0 0.0
        %1399 = vmatprep.subr.mxu0 0.0
        %1400 = vmatpush1.msra.mxu0 0.0
        %1401 = vmatprep.subr.mxu0 0.0
        %1402 = vmatpush1.msra.mxu0 0.0
        %1403 = vmatprep.subr.mxu0 0.0
        %1404 = vmatpush1.msra.mxu0 0.0
        %1405 = vmatprep.subr.mxu0 0.0
        %1406 = vmatpush1.msra.mxu0 0.0
        %1407 = vmatprep.subr.mxu0 0.0
        %1408 = vmatpush1.msra.mxu0 0.0
        %1409 = vmatprep.subr.mxu0 0.0
        %1410 = vmatpush1.msra.mxu0 0.0
        %1411 = vmatprep.subr.mxu0 0.0
        %1412 = vmatpush1.msra.mxu0 0.0
        %1413 = vmatprep.subr.mxu0 0.0
        %1414 = vmatpush1.msra.mxu0 0.0
        %1415 = vmatprep.subr.mxu0 0.0
        %1416 = vmatpush1.msra.mxu0 0.0
        %1417 = vmatprep.subr.mxu0 0.0
        %1418 = vmatpush1.msra.mxu0 0.0
        %1419 = vmatprep.subr.mxu0 0.0
        %1420 = vmatpush1.msra.mxu0 0.0
        %1421 = vmatprep.subr.mxu0 0.0
        %1422 = vmatpush1.msra.mxu0 0.0
        %1423 = vmatprep.subr.mxu0 0.0
        %1424 = vmatpush1.msra.mxu0 0.0
        %1425 = vmatprep.subr.mxu0 0.0
        %1426 = vmatpush1.msra.mxu0 0.0
        %1427 = vmatprep.subr.mxu0 0.0
        %1428 = vmatpush1.msra.mxu0 0.0
        %1429 = vmatprep.subr.mxu0 0.0
        %1430 = vmatpush1.msra.mxu0 0.0
        %1431 = vmatprep.subr.mxu0 0.0
        %1432 = vmatpush1.msra.mxu0 0.0
        %1433 = vmatprep.subr.mxu0 0.0
        %1434 = vmatpush1.msra.mxu0 0.0
        %1435 = vmatprep.subr.mxu0 0.0
        %1436 = vmatpush1.msra.mxu0 0.0
        %1437 = vmatprep.subr.mxu0 0.0
        %1438 = vmatpush1.msra.mxu0 0.0
        %1439 = vmatprep.subr.mxu0 0.0
        %1440 = vmatpush1.msra.mxu0 0.0
        %1441 = vmatprep.subr.mxu0 0.0
        %1442 = vmatpush1.msra.mxu0 0.0
        %1443 = vmatprep.subr.mxu0 0.0
        %1444 = vmatpush1.msra.mxu0 0.0
        %1445 = vmatprep.subr.mxu0 0.0
        %1446 = vmatpush1.msra.mxu0 0.0
        %1447 = vmatprep.subr.mxu0 0.0
        %1448 = vmatpush1.msra.mxu0 0.0
        %1449 = vmatprep.subr.mxu0 0.0
        %1450 = vmatpush1.msra.mxu0 0.0
        %1451 = vmatprep.subr.mxu0 0.0
        %1452 = vmatpush1.msra.mxu0 0.0
        %1453 = vmatprep.subr.mxu0 0.0
        %1454 = vmatpush1.msra.mxu0 0.0
        %1455 = vmatprep.mubr.f32.mxu0 0.0
        %1456 = vmatmul.mubr.f32.gmra.mrb[0].mxu0 %v1386
        %v1457 = vpop.f32.mrb[0].mxu0
        %v1458 = vadd.f32 0.0, %v1457
        %v1459 = vpop.f32.mrb[0].mxu0
        %v1460 = vadd.f32 0.0, %v1459
        %1461 = vmatprep.mubr.f32.mxu0 0.0
        %1462 = vmatmul.mubr.f32.gmra.mrb[0].mxu0 %v1389
        %v1463 = vpop.f32.mrb[0].mxu0
        %v1464 = vadd.f32 0.0, %v1463
        %v1465 = vpop.f32.mrb[0].mxu0
        %v1466 = vadd.f32 0.0, %v1465
        %1467 = vdwg.mxu0
        %v1469 = vsel %vm1384, %v1367, 0
        %v1472 = vsel %vm1384, %v1368, 0
        %1474 = vmatprep.subr.mxu0 %v1364
        %1475 = vmatpush1.msra.mxu0 %v1363
        %1476 = vmatprep.subr.mxu0 %v1366
        %1477 = vmatpush1.msra.mxu0 %v1365
        %1478 = vmatprep.subr.mxu0 0.0
        %1479 = vmatpush1.msra.mxu0 0.0
        %1480 = vmatprep.subr.mxu0 0.0
        %1481 = vmatpush1.msra.mxu0 0.0
        %1482 = vmatprep.subr.mxu0 0.0
        %1483 = vmatpush1.msra.mxu0 0.0
        %1484 = vmatprep.subr.mxu0 0.0
        %1485 = vmatpush1.msra.mxu0 0.0
        %1486 = vmatprep.subr.mxu0 0.0
        %1487 = vmatpush1.msra.mxu0 0.0
        %1488 = vmatprep.subr.mxu0 0.0
        %1489 = vmatpush1.msra.mxu0 0.0
        %1490 = vmatprep.subr.mxu0 0.0
        %1491 = vmatpush1.msra.mxu0 0.0
        %1492 = vmatprep.subr.mxu0 0.0
        %1493 = vmatpush1.msra.mxu0 0.0
        %1494 = vmatprep.subr.mxu0 0.0
        %1495 = vmatpush1.msra.mxu0 0.0
        %1496 = vmatprep.subr.mxu0 0.0
        %1497 = vmatpush1.msra.mxu0 0.0
        %1498 = vmatprep.subr.mxu0 0.0
        %1499 = vmatpush1.msra.mxu0 0.0
        %1500 = vmatprep.subr.mxu0 0.0
        %1501 = vmatpush1.msra.mxu0 0.0
        %1502 = vmatprep.subr.mxu0 0.0
        %1503 = vmatpush1.msra.mxu0 0.0
        %1504 = vmatprep.subr.mxu0 0.0
        %1505 = vmatpush1.msra.mxu0 0.0
        %1506 = vmatprep.subr.mxu0 0.0
        %1507 = vmatpush1.msra.mxu0 0.0
        %1508 = vmatprep.subr.mxu0 0.0
        %1509 = vmatpush1.msra.mxu0 0.0
        %1510 = vmatprep.subr.mxu0 0.0
        %1511 = vmatpush1.msra.mxu0 0.0
        %1512 = vmatprep.subr.mxu0 0.0
        %1513 = vmatpush1.msra.mxu0 0.0
        %1514 = vmatprep.subr.mxu0 0.0
        %1515 = vmatpush1.msra.mxu0 0.0
        %1516 = vmatprep.subr.mxu0 0.0
        %1517 = vmatpush1.msra.mxu0 0.0
        %1518 = vmatprep.subr.mxu0 0.0
        %1519 = vmatpush1.msra.mxu0 0.0
        %1520 = vmatprep.subr.mxu0 0.0
        %1521 = vmatpush1.msra.mxu0 0.0
        %1522 = vmatprep.subr.mxu0 0.0
        %1523 = vmatpush1.msra.mxu0 0.0
        %1524 = vmatprep.subr.mxu0 0.0
        %1525 = vmatpush1.msra.mxu0 0.0
        %1526 = vmatprep.subr.mxu0 0.0
        %1527 = vmatpush1.msra.mxu0 0.0
        %1528 = vmatprep.subr.mxu0 0.0
        %1529 = vmatpush1.msra.mxu0 0.0
        %1530 = vmatprep.subr.mxu0 0.0
        %1531 = vmatpush1.msra.mxu0 0.0
        %1532 = vmatprep.subr.mxu0 0.0
        %1533 = vmatpush1.msra.mxu0 0.0
        %1534 = vmatprep.subr.mxu0 0.0
        %1535 = vmatpush1.msra.mxu0 0.0
        %1536 = vmatprep.subr.mxu0 0.0
        %1537 = vmatpush1.msra.mxu0 0.0
        %1538 = vmatprep.mubr.f32.mxu0 0.0
        %1539 = vmatmul.mubr.f32.gmra.mrb[0].mxu0 %v1469
        %v1540 = vpop.f32.mrb[0].mxu0
        %v1541 = vadd.f32 %v1458, %v1540
        %v1542 = vpop.f32.mrb[0].mxu0
        %v1543 = vadd.f32 %v1460, %v1542
        %1544 = vmatprep.mubr.f32.mxu0 0.0
        %1545 = vmatmul.mubr.f32.gmra.mrb[0].mxu0 %v1472
        %v1546 = vpop.f32.mrb[0].mxu0
        %v1547 = vadd.f32 %v1464, %v1546
        %v1548 = vpop.f32.mrb[0].mxu0
        %v1549 = vadd.f32 %v1466, %v1548
        %1550 = vdwg.mxu0
        %1551 = vrot.lane.b32.xlu0 %v1363, 126
        %v1552 = vpop.permute.xlu0 %1551
        %1553 = vrot.lane.b32.xlu0 %v1365, 126
        %v1554 = vpop.permute.xlu0 %1553
        %1555 = vrot.lane.b32.xlu0 %v1364, 126
        %v1556 = vpop.permute.xlu0 %1555
        %1557 = vrot.lane.b32.xlu0 %v1366, 126
        %v1558 = vpop.permute.xlu0 %1557
        %v1559 = vsel %vm630, %v1552, %v1556
        %v1560 = vsel %vm630, %v1554, %v1558
        %v1561 = vsel %vm630, %v1556, %v1552
        %v1562 = vsel %vm630, %v1558, %v1554
        %s1563 = scalar_lea.vmem %s3, 32
        %v1564 = vld [vmem:[%s1563] sm:$0xff]
        %v1565 = vld [vmem:[%s1563 + $0x8] sm:$0xff]
        %v1567 = vsel %vm1384, %v1564, 0
        %v1570 = vsel %vm1384, %v1565, 0
        %1572 = vmatprep.subr.mxu0 %v1561
        %1573 = vmatpush1.msra.mxu0 %v1559
        %1574 = vmatprep.subr.mxu0 %v1562
        %1575 = vmatpush1.msra.mxu0 %v1560
        %1576 = vmatprep.subr.mxu0 0.0
        %1577 = vmatpush1.msra.mxu0 0.0
        %1578 = vmatprep.subr.mxu0 0.0
        %1579 = vmatpush1.msra.mxu0 0.0
        %1580 = vmatprep.subr.mxu0 0.0
        %1581 = vmatpush1.msra.mxu0 0.0
        %1582 = vmatprep.subr.mxu0 0.0
        %1583 = vmatpush1.msra.mxu0 0.0
        %1584 = vmatprep.subr.mxu0 0.0
        %1585 = vmatpush1.msra.mxu0 0.0
        %1586 = vmatprep.subr.mxu0 0.0
        %1587 = vmatpush1.msra.mxu0 0.0
        %1588 = vmatprep.subr.mxu0 0.0
        %1589 = vmatpush1.msra.mxu0 0.0
        %1590 = vmatprep.subr.mxu0 0.0
        %1591 = vmatpush1.msra.mxu0 0.0
        %1592 = vmatprep.subr.mxu0 0.0
        %1593 = vmatpush1.msra.mxu0 0.0
        %1594 = vmatprep.subr.mxu0 0.0
        %1595 = vmatpush1.msra.mxu0 0.0
        %1596 = vmatprep.subr.mxu0 0.0
        %1597 = vmatpush1.msra.mxu0 0.0
        %1598 = vmatprep.subr.mxu0 0.0
        %1599 = vmatpush1.msra.mxu0 0.0
        %1600 = vmatprep.subr.mxu0 0.0
        %1601 = vmatpush1.msra.mxu0 0.0
        %1602 = vmatprep.subr.mxu0 0.0
        %1603 = vmatpush1.msra.mxu0 0.0
        %1604 = vmatprep.subr.mxu0 0.0
        %1605 = vmatpush1.msra.mxu0 0.0
        %1606 = vmatprep.subr.mxu0 0.0
        %1607 = vmatpush1.msra.mxu0 0.0
        %1608 = vmatprep.subr.mxu0 0.0
        %1609 = vmatpush1.msra.mxu0 0.0
        %1610 = vmatprep.subr.mxu0 0.0
        %1611 = vmatpush1.msra.mxu0 0.0
        %1612 = vmatprep.subr.mxu0 0.0
        %1613 = vmatpush1.msra.mxu0 0.0
        %1614 = vmatprep.subr.mxu0 0.0
        %1615 = vmatpush1.msra.mxu0 0.0
        %1616 = vmatprep.subr.mxu0 0.0
        %1617 = vmatpush1.msra.mxu0 0.0
        %1618 = vmatprep.subr.mxu0 0.0
        %1619 = vmatpush1.msra.mxu0 0.0
        %1620 = vmatprep.subr.mxu0 0.0
        %1621 = vmatpush1.msra.mxu0 0.0
        %1622 = vmatprep.subr.mxu0 0.0
        %1623 = vmatpush1.msra.mxu0 0.0
        %1624 = vmatprep.subr.mxu0 0.0
        %1625 = vmatpush1.msra.mxu0 0.0
        %1626 = vmatprep.subr.mxu0 0.0
        %1627 = vmatpush1.msra.mxu0 0.0
        %1628 = vmatprep.subr.mxu0 0.0
        %1629 = vmatpush1.msra.mxu0 0.0
        %1630 = vmatprep.subr.mxu0 0.0
        %1631 = vmatpush1.msra.mxu0 0.0
        %1632 = vmatprep.subr.mxu0 0.0
        %1633 = vmatpush1.msra.mxu0 0.0
        %1634 = vmatprep.subr.mxu0 0.0
        %1635 = vmatpush1.msra.mxu0 0.0
        %1636 = vmatprep.mubr.f32.mxu0 0.0
        %1637 = vmatmul.mubr.f32.gmra.mrb[0].mxu0 %v1567
        %v1638 = vpop.f32.mrb[0].mxu0
        %v1639 = vadd.f32 0.0, %v1638
        %v1640 = vpop.f32.mrb[0].mxu0
        %v1641 = vadd.f32 0.0, %v1640
        %1642 = vmatprep.mubr.f32.mxu0 0.0
        %1643 = vmatmul.mubr.f32.gmra.mrb[0].mxu0 %v1570
        %v1644 = vpop.f32.mrb[0].mxu0
        %v1645 = vadd.f32 0.0, %v1644
        %v1646 = vpop.f32.mrb[0].mxu0
        %v1647 = vadd.f32 0.0, %v1646
        %1648 = vdwg.mxu0
        %v1649 = vadd.f32 %v1541, %v1639
        %v1650 = vadd.f32 %v1543, %v1641
        %v1651 = vadd.f32 %v1547, %v1645
        %v1652 = vadd.f32 %v1549, %v1647
        %1653 = vrot.lane.b32.xlu0 %v1363, 112
        %v1654 = vpop.permute.xlu0 %1653
        %1655 = vrot.lane.b32.xlu0 %v1365, 112
        %v1656 = vpop.permute.xlu0 %1655
        %1657 = vrot.lane.b32.xlu0 %v1364, 112
        %v1658 = vpop.permute.xlu0 %1657
        %1659 = vrot.lane.b32.xlu0 %v1366, 112
        %v1660 = vpop.permute.xlu0 %1659
        %v1661 = vsel %vm733, %v1654, %v1658
        %v1662 = vsel %vm733, %v1656, %v1660
        %v1663 = vsel %vm733, %v1658, %v1654
        %v1664 = vsel %vm733, %v1660, %v1656
        %s1665 = scalar_lea.vmem %s3, 48
        %v1666 = vld [vmem:[%s1665] sm:$0xff]
        %v1667 = vld [vmem:[%s1665 + $0x8] sm:$0xff]
        %v1669 = vsel %vm1384, %v1666, 0
        %v1672 = vsel %vm1384, %v1667, 0
        %1674 = vmatprep.subr.mxu0 %v1663
        %1675 = vmatpush1.msra.mxu0 %v1661
        %1676 = vmatprep.subr.mxu0 %v1664
        %1677 = vmatpush1.msra.mxu0 %v1662
        %1678 = vmatprep.subr.mxu0 0.0
        %1679 = vmatpush1.msra.mxu0 0.0
        %1680 = vmatprep.subr.mxu0 0.0
        %1681 = vmatpush1.msra.mxu0 0.0
        %1682 = vmatprep.subr.mxu0 0.0
        %1683 = vmatpush1.msra.mxu0 0.0
        %1684 = vmatprep.subr.mxu0 0.0
        %1685 = vmatpush1.msra.mxu0 0.0
        %1686 = vmatprep.subr.mxu0 0.0
        %1687 = vmatpush1.msra.mxu0 0.0
        %1688 = vmatprep.subr.mxu0 0.0
        %1689 = vmatpush1.msra.mxu0 0.0
        %1690 = vmatprep.subr.mxu0 0.0
        %1691 = vmatpush1.msra.mxu0 0.0
        %1692 = vmatprep.subr.mxu0 0.0
        %1693 = vmatpush1.msra.mxu0 0.0
        %1694 = vmatprep.subr.mxu0 0.0
        %1695 = vmatpush1.msra.mxu0 0.0
        %1696 = vmatprep.subr.mxu0 0.0
        %1697 = vmatpush1.msra.mxu0 0.0
        %1698 = vmatprep.subr.mxu0 0.0
        %1699 = vmatpush1.msra.mxu0 0.0
        %1700 = vmatprep.subr.mxu0 0.0
        %1701 = vmatpush1.msra.mxu0 0.0
        %1702 = vmatprep.subr.mxu0 0.0
        %1703 = vmatpush1.msra.mxu0 0.0
        %1704 = vmatprep.subr.mxu0 0.0
        %1705 = vmatpush1.msra.mxu0 0.0
        %1706 = vmatprep.subr.mxu0 0.0
        %1707 = vmatpush1.msra.mxu0 0.0
        %1708 = vmatprep.subr.mxu0 0.0
        %1709 = vmatpush1.msra.mxu0 0.0
        %1710 = vmatprep.subr.mxu0 0.0
        %1711 = vmatpush1.msra.mxu0 0.0
        %1712 = vmatprep.subr.mxu0 0.0
        %1713 = vmatpush1.msra.mxu0 0.0
        %1714 = vmatprep.subr.mxu0 0.0
        %1715 = vmatpush1.msra.mxu0 0.0
        %1716 = vmatprep.subr.mxu0 0.0
        %1717 = vmatpush1.msra.mxu0 0.0
        %1718 = vmatprep.subr.mxu0 0.0
        %1719 = vmatpush1.msra.mxu0 0.0
        %1720 = vmatprep.subr.mxu0 0.0
        %1721 = vmatpush1.msra.mxu0 0.0
        %1722 = vmatprep.subr.mxu0 0.0
        %1723 = vmatpush1.msra.mxu0 0.0
        %1724 = vmatprep.subr.mxu0 0.0
        %1725 = vmatpush1.msra.mxu0 0.0
        %1726 = vmatprep.subr.mxu0 0.0
        %1727 = vmatpush1.msra.mxu0 0.0
        %1728 = vmatprep.subr.mxu0 0.0
        %1729 = vmatpush1.msra.mxu0 0.0
        %1730 = vmatprep.subr.mxu0 0.0
        %1731 = vmatpush1.msra.mxu0 0.0
        %1732 = vmatprep.subr.mxu0 0.0
        %1733 = vmatpush1.msra.mxu0 0.0
        %1734 = vmatprep.subr.mxu0 0.0
        %1735 = vmatpush1.msra.mxu0 0.0
        %1736 = vmatprep.subr.mxu0 0.0
        %1737 = vmatpush1.msra.mxu0 0.0
        %1738 = vmatprep.mubr.f32.mxu0 0.0
        %1739 = vmatmul.mubr.f32.gmra.mrb[0].mxu0 %v1669
        %v1740 = vpop.f32.mrb[0].mxu0
        %v1741 = vadd.f32 0.0, %v1740
        %v1742 = vpop.f32.mrb[0].mxu0
        %v1743 = vadd.f32 0.0, %v1742
        %1744 = vmatprep.mubr.f32.mxu0 0.0
        %1745 = vmatmul.mubr.f32.gmra.mrb[0].mxu0 %v1672
        %v1746 = vpop.f32.mrb[0].mxu0
        %v1747 = vadd.f32 0.0, %v1746
        %v1748 = vpop.f32.mrb[0].mxu0
        %v1749 = vadd.f32 0.0, %v1748
        %1750 = vdwg.mxu0
        %v1751 = vadd.f32 %v1649, %v1741
        %v1752 = vadd.f32 %v1650, %v1743
        %v1753 = vadd.f32 %v1651, %v1747
        %v1754 = vadd.f32 %v1652, %v1749
        %1755 = vrot.lane.b32.xlu0 %v1363, 111
        %v1756 = vpop.permute.xlu0 %1755
        %1757 = vrot.lane.b32.xlu0 %v1365, 111
        %v1758 = vpop.permute.xlu0 %1757
        %1759 = vrot.lane.b32.xlu0 %v1364, 111
        %v1760 = vpop.permute.xlu0 %1759
        %1761 = vrot.lane.b32.xlu0 %v1366, 111
        %v1762 = vpop.permute.xlu0 %1761
        %v1763 = vsel %vm836, %v1756, %v1760
        %v1764 = vsel %vm836, %v1758, %v1762
        %v1765 = vsel %vm836, %v1760, %v1756
        %v1766 = vsel %vm836, %v1762, %v1758
        %s1767 = scalar_lea.vmem %s3, 64
        %v1768 = vld [vmem:[%s1767] sm:$0xff]
        %v1769 = vld [vmem:[%s1767 + $0x8] sm:$0xff]
        %v1771 = vsel %vm1384, %v1768, 0
        %v1774 = vsel %vm1384, %v1769, 0
        %1776 = vmatprep.subr.mxu0 %v1765
        %1777 = vmatpush1.msra.mxu0 %v1763
        %1778 = vmatprep.subr.mxu0 %v1766
        %1779 = vmatpush1.msra.mxu0 %v1764
        %1780 = vmatprep.subr.mxu0 0.0
        %1781 = vmatpush1.msra.mxu0 0.0
        %1782 = vmatprep.subr.mxu0 0.0
        %1783 = vmatpush1.msra.mxu0 0.0
        %1784 = vmatprep.subr.mxu0 0.0
        %1785 = vmatpush1.msra.mxu0 0.0
        %1786 = vmatprep.subr.mxu0 0.0
        %1787 = vmatpush1.msra.mxu0 0.0
        %1788 = vmatprep.subr.mxu0 0.0
        %1789 = vmatpush1.msra.mxu0 0.0
        %1790 = vmatprep.subr.mxu0 0.0
        %1791 = vmatpush1.msra.mxu0 0.0
        %1792 = vmatprep.subr.mxu0 0.0
        %1793 = vmatpush1.msra.mxu0 0.0
        %1794 = vmatprep.subr.mxu0 0.0
        %1795 = vmatpush1.msra.mxu0 0.0
        %1796 = vmatprep.subr.mxu0 0.0
        %1797 = vmatpush1.msra.mxu0 0.0
        %1798 = vmatprep.subr.mxu0 0.0
        %1799 = vmatpush1.msra.mxu0 0.0
        %1800 = vmatprep.subr.mxu0 0.0
        %1801 = vmatpush1.msra.mxu0 0.0
        %1802 = vmatprep.subr.mxu0 0.0
        %1803 = vmatpush1.msra.mxu0 0.0
        %1804 = vmatprep.subr.mxu0 0.0
        %1805 = vmatpush1.msra.mxu0 0.0
        %1806 = vmatprep.subr.mxu0 0.0
        %1807 = vmatpush1.msra.mxu0 0.0
        %1808 = vmatprep.subr.mxu0 0.0
        %1809 = vmatpush1.msra.mxu0 0.0
        %1810 = vmatprep.subr.mxu0 0.0
        %1811 = vmatpush1.msra.mxu0 0.0
        %1812 = vmatprep.subr.mxu0 0.0
        %1813 = vmatpush1.msra.mxu0 0.0
        %1814 = vmatprep.subr.mxu0 0.0
        %1815 = vmatpush1.msra.mxu0 0.0
        %1816 = vmatprep.subr.mxu0 0.0
        %1817 = vmatpush1.msra.mxu0 0.0
        %1818 = vmatprep.subr.mxu0 0.0
        %1819 = vmatpush1.msra.mxu0 0.0
        %1820 = vmatprep.subr.mxu0 0.0
        %1821 = vmatpush1.msra.mxu0 0.0
        %1822 = vmatprep.subr.mxu0 0.0
        %1823 = vmatpush1.msra.mxu0 0.0
        %1824 = vmatprep.subr.mxu0 0.0
        %1825 = vmatpush1.msra.mxu0 0.0
        %1826 = vmatprep.subr.mxu0 0.0
        %1827 = vmatpush1.msra.mxu0 0.0
        %1828 = vmatprep.subr.mxu0 0.0
        %1829 = vmatpush1.msra.mxu0 0.0
        %1830 = vmatprep.subr.mxu0 0.0
        %1831 = vmatpush1.msra.mxu0 0.0
        %1832 = vmatprep.subr.mxu0 0.0
        %1833 = vmatpush1.msra.mxu0 0.0
        %1834 = vmatprep.subr.mxu0 0.0
        %1835 = vmatpush1.msra.mxu0 0.0
        %1836 = vmatprep.subr.mxu0 0.0
        %1837 = vmatpush1.msra.mxu0 0.0
        %1838 = vmatprep.subr.mxu0 0.0
        %1839 = vmatpush1.msra.mxu0 0.0
        %1840 = vmatprep.mubr.f32.mxu0 0.0
        %1841 = vmatmul.mubr.f32.gmra.mrb[0].mxu0 %v1771
        %v1842 = vpop.f32.mrb[0].mxu0
        %v1843 = vadd.f32 0.0, %v1842
        %v1844 = vpop.f32.mrb[0].mxu0
        %v1845 = vadd.f32 0.0, %v1844
        %1846 = vmatprep.mubr.f32.mxu0 0.0
        %1847 = vmatmul.mubr.f32.gmra.mrb[0].mxu0 %v1774
        %v1848 = vpop.f32.mrb[0].mxu0
        %v1849 = vadd.f32 0.0, %v1848
        %v1850 = vpop.f32.mrb[0].mxu0
        %v1851 = vadd.f32 0.0, %v1850
        %1852 = vdwg.mxu0
        %v1853 = vadd.f32 %v1751, %v1843
        %v1854 = vadd.f32 %v1752, %v1845
        %v1855 = vadd.f32 %v1753, %v1849
        %v1856 = vadd.f32 %v1754, %v1851
        %1857 = vrot.lane.b32.xlu0 %v1363, 110
        %v1858 = vpop.permute.xlu0 %1857
        %1859 = vrot.lane.b32.xlu0 %v1365, 110
        %v1860 = vpop.permute.xlu0 %1859
        %1861 = vrot.lane.b32.xlu0 %v1364, 110
        %v1862 = vpop.permute.xlu0 %1861
        %1863 = vrot.lane.b32.xlu0 %v1366, 110
        %v1864 = vpop.permute.xlu0 %1863
        %v1865 = vsel %vm939, %v1858, %v1862
        %v1866 = vsel %vm939, %v1860, %v1864
        %v1867 = vsel %vm939, %v1862, %v1858
        %v1868 = vsel %vm939, %v1864, %v1860
        %s1869 = scalar_lea.vmem %s3, 80
        %v1870 = vld [vmem:[%s1869] sm:$0xff]
        %v1871 = vld [vmem:[%s1869 + $0x8] sm:$0xff]
        %v1873 = vsel %vm1384, %v1870, 0
        %v1876 = vsel %vm1384, %v1871, 0
        %1878 = vmatprep.subr.mxu0 %v1867
        %1879 = vmatpush1.msra.mxu0 %v1865
        %1880 = vmatprep.subr.mxu0 %v1868
        %1881 = vmatpush1.msra.mxu0 %v1866
        %1882 = vmatprep.subr.mxu0 0.0
        %1883 = vmatpush1.msra.mxu0 0.0
        %1884 = vmatprep.subr.mxu0 0.0
        %1885 = vmatpush1.msra.mxu0 0.0
        %1886 = vmatprep.subr.mxu0 0.0
        %1887 = vmatpush1.msra.mxu0 0.0
        %1888 = vmatprep.subr.mxu0 0.0
        %1889 = vmatpush1.msra.mxu0 0.0
        %1890 = vmatprep.subr.mxu0 0.0
        %1891 = vmatpush1.msra.mxu0 0.0
        %1892 = vmatprep.subr.mxu0 0.0
        %1893 = vmatpush1.msra.mxu0 0.0
        %1894 = vmatprep.subr.mxu0 0.0
        %1895 = vmatpush1.msra.mxu0 0.0
        %1896 = vmatprep.subr.mxu0 0.0
        %1897 = vmatpush1.msra.mxu0 0.0
        %1898 = vmatprep.subr.mxu0 0.0
        %1899 = vmatpush1.msra.mxu0 0.0
        %1900 = vmatprep.subr.mxu0 0.0
        %1901 = vmatpush1.msra.mxu0 0.0
        %1902 = vmatprep.subr.mxu0 0.0
        %1903 = vmatpush1.msra.mxu0 0.0
        %1904 = vmatprep.subr.mxu0 0.0
        %1905 = vmatpush1.msra.mxu0 0.0
        %1906 = vmatprep.subr.mxu0 0.0
        %1907 = vmatpush1.msra.mxu0 0.0
        %1908 = vmatprep.subr.mxu0 0.0
        %1909 = vmatpush1.msra.mxu0 0.0
        %1910 = vmatprep.subr.mxu0 0.0
        %1911 = vmatpush1.msra.mxu0 0.0
        %1912 = vmatprep.subr.mxu0 0.0
        %1913 = vmatpush1.msra.mxu0 0.0
        %1914 = vmatprep.subr.mxu0 0.0
        %1915 = vmatpush1.msra.mxu0 0.0
        %1916 = vmatprep.subr.mxu0 0.0
        %1917 = vmatpush1.msra.mxu0 0.0
        %1918 = vmatprep.subr.mxu0 0.0
        %1919 = vmatpush1.msra.mxu0 0.0
        %1920 = vmatprep.subr.mxu0 0.0
        %1921 = vmatpush1.msra.mxu0 0.0
        %1922 = vmatprep.subr.mxu0 0.0
        %1923 = vmatpush1.msra.mxu0 0.0
        %1924 = vmatprep.subr.mxu0 0.0
        %1925 = vmatpush1.msra.mxu0 0.0
        %1926 = vmatprep.subr.mxu0 0.0
        %1927 = vmatpush1.msra.mxu0 0.0
        %1928 = vmatprep.subr.mxu0 0.0
        %1929 = vmatpush1.msra.mxu0 0.0
        %1930 = vmatprep.subr.mxu0 0.0
        %1931 = vmatpush1.msra.mxu0 0.0
        %1932 = vmatprep.subr.mxu0 0.0
        %1933 = vmatpush1.msra.mxu0 0.0
        %1934 = vmatprep.subr.mxu0 0.0
        %1935 = vmatpush1.msra.mxu0 0.0
        %1936 = vmatprep.subr.mxu0 0.0
        %1937 = vmatpush1.msra.mxu0 0.0
        %1938 = vmatprep.subr.mxu0 0.0
        %1939 = vmatpush1.msra.mxu0 0.0
        %1940 = vmatprep.subr.mxu0 0.0
        %1941 = vmatpush1.msra.mxu0 0.0
        %1942 = vmatprep.mubr.f32.mxu0 0.0
        %1943 = vmatmul.mubr.f32.gmra.mrb[0].mxu0 %v1873
        %v1944 = vpop.f32.mrb[0].mxu0
        %v1945 = vadd.f32 0.0, %v1944
        %v1946 = vpop.f32.mrb[0].mxu0
        %v1947 = vadd.f32 0.0, %v1946
        %1948 = vmatprep.mubr.f32.mxu0 0.0
        %1949 = vmatmul.mubr.f32.gmra.mrb[0].mxu0 %v1876
        %v1950 = vpop.f32.mrb[0].mxu0
        %v1951 = vadd.f32 0.0, %v1950
        %v1952 = vpop.f32.mrb[0].mxu0
        %v1953 = vadd.f32 0.0, %v1952
        %1954 = vdwg.mxu0
        %v1955 = vadd.f32 %v1853, %v1945
        %v1956 = vadd.f32 %v1854, %v1947
        %v1957 = vadd.f32 %v1855, %v1951
        %v1958 = vadd.f32 %v1856, %v1953
        %1959 = vrot.lane.b32.xlu0 %v1363, 96
        %v1960 = vpop.permute.xlu0 %1959
        %1961 = vrot.lane.b32.xlu0 %v1365, 96
        %v1962 = vpop.permute.xlu0 %1961
        %1963 = vrot.lane.b32.xlu0 %v1364, 96
        %v1964 = vpop.permute.xlu0 %1963
        %1965 = vrot.lane.b32.xlu0 %v1366, 96
        %v1966 = vpop.permute.xlu0 %1965
        %v1967 = vsel %vm1042, %v1960, %v1964
        %v1968 = vsel %vm1042, %v1962, %v1966
        %v1969 = vsel %vm1042, %v1964, %v1960
        %v1970 = vsel %vm1042, %v1966, %v1962
        %s1971 = scalar_lea.vmem %s3, 96
        %v1972 = vld [vmem:[%s1971] sm:$0xff]
        %v1973 = vld [vmem:[%s1971 + $0x8] sm:$0xff]
        %v1975 = vsel %vm1384, %v1972, 0
        %v1978 = vsel %vm1384, %v1973, 0
        %1980 = vmatprep.subr.mxu0 %v1969
        %1981 = vmatpush1.msra.mxu0 %v1967
        %1982 = vmatprep.subr.mxu0 %v1970
        %1983 = vmatpush1.msra.mxu0 %v1968
        %1984 = vmatprep.subr.mxu0 0.0
        %1985 = vmatpush1.msra.mxu0 0.0
        %1986 = vmatprep.subr.mxu0 0.0
        %1987 = vmatpush1.msra.mxu0 0.0
        %1988 = vmatprep.subr.mxu0 0.0
        %1989 = vmatpush1.msra.mxu0 0.0
        %1990 = vmatprep.subr.mxu0 0.0
        %1991 = vmatpush1.msra.mxu0 0.0
        %1992 = vmatprep.subr.mxu0 0.0
        %1993 = vmatpush1.msra.mxu0 0.0
        %1994 = vmatprep.subr.mxu0 0.0
        %1995 = vmatpush1.msra.mxu0 0.0
        %1996 = vmatprep.subr.mxu0 0.0
        %1997 = vmatpush1.msra.mxu0 0.0
        %1998 = vmatprep.subr.mxu0 0.0
        %1999 = vmatpush1.msra.mxu0 0.0
        %2000 = vmatprep.subr.mxu0 0.0
        %2001 = vmatpush1.msra.mxu0 0.0
        %2002 = vmatprep.subr.mxu0 0.0
        %2003 = vmatpush1.msra.mxu0 0.0
        %2004 = vmatprep.subr.mxu0 0.0
        %2005 = vmatpush1.msra.mxu0 0.0
        %2006 = vmatprep.subr.mxu0 0.0
        %2007 = vmatpush1.msra.mxu0 0.0
        %2008 = vmatprep.subr.mxu0 0.0
        %2009 = vmatpush1.msra.mxu0 0.0
        %2010 = vmatprep.subr.mxu0 0.0
        %2011 = vmatpush1.msra.mxu0 0.0
        %2012 = vmatprep.subr.mxu0 0.0
        %2013 = vmatpush1.msra.mxu0 0.0
        %2014 = vmatprep.subr.mxu0 0.0
        %2015 = vmatpush1.msra.mxu0 0.0
        %2016 = vmatprep.subr.mxu0 0.0
        %2017 = vmatpush1.msra.mxu0 0.0
        %2018 = vmatprep.subr.mxu0 0.0
        %2019 = vmatpush1.msra.mxu0 0.0
        %2020 = vmatprep.subr.mxu0 0.0
        %2021 = vmatpush1.msra.mxu0 0.0
        %2022 = vmatprep.subr.mxu0 0.0
        %2023 = vmatpush1.msra.mxu0 0.0
        %2024 = vmatprep.subr.mxu0 0.0
        %2025 = vmatpush1.msra.mxu0 0.0
        %2026 = vmatprep.subr.mxu0 0.0
        %2027 = vmatpush1.msra.mxu0 0.0
        %2028 = vmatprep.subr.mxu0 0.0
        %2029 = vmatpush1.msra.mxu0 0.0
        %2030 = vmatprep.subr.mxu0 0.0
        %2031 = vmatpush1.msra.mxu0 0.0
        %2032 = vmatprep.subr.mxu0 0.0
        %2033 = vmatpush1.msra.mxu0 0.0
        %2034 = vmatprep.subr.mxu0 0.0
        %2035 = vmatpush1.msra.mxu0 0.0
        %2036 = vmatprep.subr.mxu0 0.0
        %2037 = vmatpush1.msra.mxu0 0.0
        %2038 = vmatprep.subr.mxu0 0.0
        %2039 = vmatpush1.msra.mxu0 0.0
        %2040 = vmatprep.subr.mxu0 0.0
        %2041 = vmatpush1.msra.mxu0 0.0
        %2042 = vmatprep.subr.mxu0 0.0
        %2043 = vmatpush1.msra.mxu0 0.0
        %2044 = vmatprep.mubr.f32.mxu0 0.0
        %2045 = vmatmul.mubr.f32.gmra.mrb[0].mxu0 %v1975
        %v2046 = vpop.f32.mrb[0].mxu0
        %v2047 = vadd.f32 0.0, %v2046
        %v2048 = vpop.f32.mrb[0].mxu0
        %v2049 = vadd.f32 0.0, %v2048
        %2050 = vmatprep.mubr.f32.mxu0 0.0
        %2051 = vmatmul.mubr.f32.gmra.mrb[0].mxu0 %v1978
        %v2052 = vpop.f32.mrb[0].mxu0
        %v2053 = vadd.f32 0.0, %v2052
        %v2054 = vpop.f32.mrb[0].mxu0
        %v2055 = vadd.f32 0.0, %v2054
        %2056 = vdwg.mxu0
        %v2057 = vadd.f32 %v1955, %v2047
        %v2058 = vadd.f32 %v1956, %v2049
        %v2059 = vadd.f32 %v1957, %v2053
        %v2060 = vadd.f32 %v1958, %v2055
        %2061 = vrot.lane.b32.xlu0 %v1363, 95
        %v2062 = vpop.permute.xlu0 %2061
        %2063 = vrot.lane.b32.xlu0 %v1365, 95
        %v2064 = vpop.permute.xlu0 %2063
        %2065 = vrot.lane.b32.xlu0 %v1364, 95
        %v2066 = vpop.permute.xlu0 %2065
        %2067 = vrot.lane.b32.xlu0 %v1366, 95
        %v2068 = vpop.permute.xlu0 %2067
        %v2069 = vsel %vm1145, %v2062, %v2066
        %v2070 = vsel %vm1145, %v2064, %v2068
        %v2071 = vsel %vm1145, %v2066, %v2062
        %v2072 = vsel %vm1145, %v2068, %v2064
        %s2073 = scalar_lea.vmem %s3, 112
        %v2074 = vld [vmem:[%s2073] sm:$0xff]
        %v2075 = vld [vmem:[%s2073 + $0x8] sm:$0xff]
        %v2077 = vsel %vm1384, %v2074, 0
        %v2080 = vsel %vm1384, %v2075, 0
        %2082 = vmatprep.subr.mxu0 %v2071
        %2083 = vmatpush1.msra.mxu0 %v2069
        %2084 = vmatprep.subr.mxu0 %v2072
        %2085 = vmatpush1.msra.mxu0 %v2070
        %2086 = vmatprep.subr.mxu0 0.0
        %2087 = vmatpush1.msra.mxu0 0.0
        %2088 = vmatprep.subr.mxu0 0.0
        %2089 = vmatpush1.msra.mxu0 0.0
        %2090 = vmatprep.subr.mxu0 0.0
        %2091 = vmatpush1.msra.mxu0 0.0
        %2092 = vmatprep.subr.mxu0 0.0
        %2093 = vmatpush1.msra.mxu0 0.0
        %2094 = vmatprep.subr.mxu0 0.0
        %2095 = vmatpush1.msra.mxu0 0.0
        %2096 = vmatprep.subr.mxu0 0.0
        %2097 = vmatpush1.msra.mxu0 0.0
        %2098 = vmatprep.subr.mxu0 0.0
        %2099 = vmatpush1.msra.mxu0 0.0
        %2100 = vmatprep.subr.mxu0 0.0
        %2101 = vmatpush1.msra.mxu0 0.0
        %2102 = vmatprep.subr.mxu0 0.0
        %2103 = vmatpush1.msra.mxu0 0.0
        %2104 = vmatprep.subr.mxu0 0.0
        %2105 = vmatpush1.msra.mxu0 0.0
        %2106 = vmatprep.subr.mxu0 0.0
        %2107 = vmatpush1.msra.mxu0 0.0
        %2108 = vmatprep.subr.mxu0 0.0
        %2109 = vmatpush1.msra.mxu0 0.0
        %2110 = vmatprep.subr.mxu0 0.0
        %2111 = vmatpush1.msra.mxu0 0.0
        %2112 = vmatprep.subr.mxu0 0.0
        %2113 = vmatpush1.msra.mxu0 0.0
        %2114 = vmatprep.subr.mxu0 0.0
        %2115 = vmatpush1.msra.mxu0 0.0
        %2116 = vmatprep.subr.mxu0 0.0
        %2117 = vmatpush1.msra.mxu0 0.0
        %2118 = vmatprep.subr.mxu0 0.0
        %2119 = vmatpush1.msra.mxu0 0.0
        %2120 = vmatprep.subr.mxu0 0.0
        %2121 = vmatpush1.msra.mxu0 0.0
        %2122 = vmatprep.subr.mxu0 0.0
        %2123 = vmatpush1.msra.mxu0 0.0
        %2124 = vmatprep.subr.mxu0 0.0
        %2125 = vmatpush1.msra.mxu0 0.0
        %2126 = vmatprep.subr.mxu0 0.0
        %2127 = vmatpush1.msra.mxu0 0.0
        %2128 = vmatprep.subr.mxu0 0.0
        %2129 = vmatpush1.msra.mxu0 0.0
        %2130 = vmatprep.subr.mxu0 0.0
        %2131 = vmatpush1.msra.mxu0 0.0
        %2132 = vmatprep.subr.mxu0 0.0
        %2133 = vmatpush1.msra.mxu0 0.0
        %2134 = vmatprep.subr.mxu0 0.0
        %2135 = vmatpush1.msra.mxu0 0.0
        %2136 = vmatprep.subr.mxu0 0.0
        %2137 = vmatpush1.msra.mxu0 0.0
        %2138 = vmatprep.subr.mxu0 0.0
        %2139 = vmatpush1.msra.mxu0 0.0
        %2140 = vmatprep.subr.mxu0 0.0
        %2141 = vmatpush1.msra.mxu0 0.0
        %2142 = vmatprep.subr.mxu0 0.0
        %2143 = vmatpush1.msra.mxu0 0.0
        %2144 = vmatprep.subr.mxu0 0.0
        %2145 = vmatpush1.msra.mxu0 0.0
        %2146 = vmatprep.mubr.f32.mxu0 0.0
        %2147 = vmatmul.mubr.f32.gmra.mrb[0].mxu0 %v2077
        %v2148 = vpop.f32.mrb[0].mxu0
        %v2149 = vadd.f32 0.0, %v2148
        %v2150 = vpop.f32.mrb[0].mxu0
        %v2151 = vadd.f32 0.0, %v2150
        %2152 = vmatprep.mubr.f32.mxu0 0.0
        %2153 = vmatmul.mubr.f32.gmra.mrb[0].mxu0 %v2080
        %v2154 = vpop.f32.mrb[0].mxu0
        %v2155 = vadd.f32 0.0, %v2154
        %v2156 = vpop.f32.mrb[0].mxu0
        %v2157 = vadd.f32 0.0, %v2156
        %2158 = vdwg.mxu0
        %v2159 = vadd.f32 %v2057, %v2149
        %v2160 = vadd.f32 %v2058, %v2151
        %v2161 = vadd.f32 %v2059, %v2155
        %v2162 = vadd.f32 %v2060, %v2157
        %2163 = vrot.lane.b32.xlu0 %v1363, 94
        %v2164 = vpop.permute.xlu0 %2163
        %2165 = vrot.lane.b32.xlu0 %v1365, 94
        %v2166 = vpop.permute.xlu0 %2165
        %2167 = vrot.lane.b32.xlu0 %v1364, 94
        %v2168 = vpop.permute.xlu0 %2167
        %2169 = vrot.lane.b32.xlu0 %v1366, 94
        %v2170 = vpop.permute.xlu0 %2169
        %v2171 = vsel %vm1248, %v2164, %v2168
        %v2172 = vsel %vm1248, %v2166, %v2170
        %v2173 = vsel %vm1248, %v2168, %v2164
        %v2174 = vsel %vm1248, %v2170, %v2166
        %s2175 = scalar_lea.vmem %s3, 128
        %v2176 = vld [vmem:[%s2175] sm:$0xff]
        %v2177 = vld [vmem:[%s2175 + $0x8] sm:$0xff]
        %v2179 = vsel %vm1384, %v2176, 0
        %v2182 = vsel %vm1384, %v2177, 0
        %2184 = vmatprep.subr.mxu0 %v2173
        %2185 = vmatpush1.msra.mxu0 %v2171
        %2186 = vmatprep.subr.mxu0 %v2174
        %2187 = vmatpush1.msra.mxu0 %v2172
        %2188 = vmatprep.subr.mxu0 0.0
        %2189 = vmatpush1.msra.mxu0 0.0
        %2190 = vmatprep.subr.mxu0 0.0
        %2191 = vmatpush1.msra.mxu0 0.0
        %2192 = vmatprep.subr.mxu0 0.0
        %2193 = vmatpush1.msra.mxu0 0.0
        %2194 = vmatprep.subr.mxu0 0.0
        %2195 = vmatpush1.msra.mxu0 0.0
        %2196 = vmatprep.subr.mxu0 0.0
        %2197 = vmatpush1.msra.mxu0 0.0
        %2198 = vmatprep.subr.mxu0 0.0
        %2199 = vmatpush1.msra.mxu0 0.0
        %2200 = vmatprep.subr.mxu0 0.0
        %2201 = vmatpush1.msra.mxu0 0.0
        %2202 = vmatprep.subr.mxu0 0.0
        %2203 = vmatpush1.msra.mxu0 0.0
        %2204 = vmatprep.subr.mxu0 0.0
        %2205 = vmatpush1.msra.mxu0 0.0
        %2206 = vmatprep.subr.mxu0 0.0
        %2207 = vmatpush1.msra.mxu0 0.0
        %2208 = vmatprep.subr.mxu0 0.0
        %2209 = vmatpush1.msra.mxu0 0.0
        %2210 = vmatprep.subr.mxu0 0.0
        %2211 = vmatpush1.msra.mxu0 0.0
        %2212 = vmatprep.subr.mxu0 0.0
        %2213 = vmatpush1.msra.mxu0 0.0
        %2214 = vmatprep.subr.mxu0 0.0
        %2215 = vmatpush1.msra.mxu0 0.0
        %2216 = vmatprep.subr.mxu0 0.0
        %2217 = vmatpush1.msra.mxu0 0.0
        %2218 = vmatprep.subr.mxu0 0.0
        %2219 = vmatpush1.msra.mxu0 0.0
        %2220 = vmatprep.subr.mxu0 0.0
        %2221 = vmatpush1.msra.mxu0 0.0
        %2222 = vmatprep.subr.mxu0 0.0
        %2223 = vmatpush1.msra.mxu0 0.0
        %2224 = vmatprep.subr.mxu0 0.0
        %2225 = vmatpush1.msra.mxu0 0.0
        %2226 = vmatprep.subr.mxu0 0.0
        %2227 = vmatpush1.msra.mxu0 0.0
        %2228 = vmatprep.subr.mxu0 0.0
        %2229 = vmatpush1.msra.mxu0 0.0
        %2230 = vmatprep.subr.mxu0 0.0
        %2231 = vmatpush1.msra.mxu0 0.0
        %2232 = vmatprep.subr.mxu0 0.0
        %2233 = vmatpush1.msra.mxu0 0.0
        %2234 = vmatprep.subr.mxu0 0.0
        %2235 = vmatpush1.msra.mxu0 0.0
        %2236 = vmatprep.subr.mxu0 0.0
        %2237 = vmatpush1.msra.mxu0 0.0
        %2238 = vmatprep.subr.mxu0 0.0
        %2239 = vmatpush1.msra.mxu0 0.0
        %2240 = vmatprep.subr.mxu0 0.0
        %2241 = vmatpush1.msra.mxu0 0.0
        %2242 = vmatprep.subr.mxu0 0.0
        %2243 = vmatpush1.msra.mxu0 0.0
        %2244 = vmatprep.subr.mxu0 0.0
        %2245 = vmatpush1.msra.mxu0 0.0
        %2246 = vmatprep.subr.mxu0 0.0
        %2247 = vmatpush1.msra.mxu0 0.0
        %2248 = vmatprep.mubr.f32.mxu0 0.0
        %2249 = vmatmul.mubr.f32.gmra.mrb[0].mxu0 %v2179
        %v2250 = vpop.f32.mrb[0].mxu0
        %v2251 = vadd.f32 0.0, %v2250
        %v2252 = vpop.f32.mrb[0].mxu0
        %v2253 = vadd.f32 0.0, %v2252
        %2254 = vmatprep.mubr.f32.mxu0 0.0
        %2255 = vmatmul.mubr.f32.gmra.mrb[0].mxu0 %v2182
        %v2256 = vpop.f32.mrb[0].mxu0
        %v2257 = vadd.f32 0.0, %v2256
        %v2258 = vpop.f32.mrb[0].mxu0
        %v2259 = vadd.f32 0.0, %v2258
        %2260 = vdwg.mxu0
        %v2261 = vadd.f32 %v2159, %v2251
        %v2262 = vadd.f32 %v2160, %v2253
        %v2263 = vadd.f32 %v2161, %v2257
        %v2264 = vadd.f32 %v2162, %v2259
        %v2265 = vld [vmem:[%s4] sm:$0xff]
        %v2266 = vld [vmem:[%s4 + $0x8] sm:$0xff]
        %2268 = vset.pattern.permute.xlu0 0
        %2269 = vperm.xlu0 %2268, %v2265
        %v2270 = vpop.permute.xlu0 %2269
        %2273 = vset.pattern.permute.xlu0 0
        %2274 = vperm.xlu0 %2273, %v2266
        %v2275 = vpop.permute.xlu0 %2274
        %v2277 = vadd.f32 %v2261, %v2270
        %v2278 = vadd.f32 %v2262, %v2270
        %v2279 = vadd.f32 %v2263, %v2275
        %v2280 = vadd.f32 %v2264, %v2275
        %v2281 = vmax.f32 %v2277, 0.0
        %v2282 = vmax.f32 %v2278, 0.0
        %v2283 = vmax.f32 %v2279, 0.0
        %v2284 = vmax.f32 %v2280, 0.0
        %2285 = vmatprep.subr.mxu0 %v335
        %2286 = vmatpush1.msra.mxu0 %v334
        %2287 = vmatprep.subr.mxu0 %v337
        %2288 = vmatpush1.msra.mxu0 %v336
        %2289 = vmatprep.subr.mxu0 %v339
        %2290 = vmatpush1.msra.mxu0 %v338
        %2291 = vmatprep.subr.mxu0 %v341
        %2292 = vmatpush1.msra.mxu0 %v340
        %2293 = vmatprep.subr.mxu0 %v343
        %2294 = vmatpush1.msra.mxu0 %v342
        %2295 = vmatprep.subr.mxu0 %v345
        %2296 = vmatpush1.msra.mxu0 %v344
        %2297 = vmatprep.subr.mxu0 %v347
        %2298 = vmatpush1.msra.mxu0 %v346
        %2299 = vmatprep.subr.mxu0 %v349
        %2300 = vmatpush1.msra.mxu0 %v348
        %2301 = vmatprep.subr.mxu0 %v351
        %2302 = vmatpush1.msra.mxu0 %v350
        %2303 = vmatprep.subr.mxu0 %v353
        %2304 = vmatpush1.msra.mxu0 %v352
        %2305 = vmatprep.subr.mxu0 %v355
        %2306 = vmatpush1.msra.mxu0 %v354
        %2307 = vmatprep.subr.mxu0 %v357
        %2308 = vmatpush1.msra.mxu0 %v356
        %2309 = vmatprep.subr.mxu0 %v359
        %2310 = vmatpush1.msra.mxu0 %v358
        %2311 = vmatprep.subr.mxu0 %v361
        %2312 = vmatpush1.msra.mxu0 %v360
        %2313 = vmatprep.subr.mxu0 %v363
        %2314 = vmatpush1.msra.mxu0 %v362
        %2315 = vmatprep.subr.mxu0 %v365
        %2316 = vmatpush1.msra.mxu0 %v364
        %2317 = vmatprep.subr.mxu0 %v367
        %2318 = vmatpush1.msra.mxu0 %v366
        %2319 = vmatprep.subr.mxu0 %v369
        %2320 = vmatpush1.msra.mxu0 %v368
        %2321 = vmatprep.subr.mxu0 %v371
        %2322 = vmatpush1.msra.mxu0 %v370
        %2323 = vmatprep.subr.mxu0 %v373
        %2324 = vmatpush1.msra.mxu0 %v372
        %2325 = vmatprep.subr.mxu0 %v375
        %2326 = vmatpush1.msra.mxu0 %v374
        %2327 = vmatprep.subr.mxu0 %v377
        %2328 = vmatpush1.msra.mxu0 %v376
        %2329 = vmatprep.subr.mxu0 %v379
        %2330 = vmatpush1.msra.mxu0 %v378
        %2331 = vmatprep.subr.mxu0 %v381
        %2332 = vmatpush1.msra.mxu0 %v380
        %2333 = vmatprep.subr.mxu0 %v383
        %2334 = vmatpush1.msra.mxu0 %v382
        %2335 = vmatprep.subr.mxu0 %v385
        %2336 = vmatpush1.msra.mxu0 %v384
        %2337 = vmatprep.subr.mxu0 %v387
        %2338 = vmatpush1.msra.mxu0 %v386
        %2339 = vmatprep.subr.mxu0 %v389
        %2340 = vmatpush1.msra.mxu0 %v388
        %2341 = vmatprep.subr.mxu0 %v391
        %2342 = vmatpush1.msra.mxu0 %v390
        %2343 = vmatprep.subr.mxu0 %v393
        %2344 = vmatpush1.msra.mxu0 %v392
        %2345 = vmatprep.subr.mxu0 %v395
        %2346 = vmatpush1.msra.mxu0 %v394
        %2347 = vmatprep.subr.mxu0 %v397
        %2348 = vmatpush1.msra.mxu0 %v396
        %2349 = vmatprep.mubr.f32.mxu0 %v2282
        %2350 = vmatmul.mubr.f32.gmra.mrb[0].mxu0 %v2281
        %v2351 = vpop.f32.mrb[0].mxu0
        %v2352 = vadd.f32 0.0, %v2351
        %v2353 = vpop.f32.mrb[0].mxu0
        %v2354 = vadd.f32 0.0, %v2353
        %2355 = vmatprep.mubr.f32.mxu0 %v2284
        %2356 = vmatmul.mubr.f32.gmra.mrb[0].mxu0 %v2283
        %v2357 = vpop.f32.mrb[0].mxu0
        %v2358 = vadd.f32 0.0, %v2357
        %v2359 = vpop.f32.mrb[0].mxu0
        %v2360 = vadd.f32 0.0, %v2359
        %2361 = vdwg.mxu0
        %2362 = vst [vmem:[%s328] sm:$0xff] %v2352
        %2363 = vst.msk [vmem:[%s328 + $0x8] sm:$0xff] %vm1384, %v2354
        %2364 = vst [vmem:[%s328 + $0x10] sm:$0xff] %v2358
        %2365 = vst.msk [vmem:[%s328 + $0x18] sm:$0xff] %vm1384, %v2360
        %2366 = vrot.lane.b32.xlu0 %v2281, 127
        %v2367 = vpop.permute.xlu0 %2366
        %2368 = vrot.lane.b32.xlu0 %v2283, 127
        %v2369 = vpop.permute.xlu0 %2368
        %2370 = vrot.lane.b32.xlu0 %v2282, 127
        %v2371 = vpop.permute.xlu0 %2370
        %2372 = vrot.lane.b32.xlu0 %v2284, 127
        %v2373 = vpop.permute.xlu0 %2372
        %v2374 = vsel %vm442, %v2367, %v2371
        %v2375 = vsel %vm442, %v2369, %v2373
        %v2376 = vsel %vm442, %v2371, %v2367
        %v2377 = vsel %vm442, %v2373, %v2369
        %v2378 = vmax.f32 %v2281, %v2374
        %v2379 = vmax.f32 %v2282, %v2376
        %v2380 = vmax.f32 %v2283, %v2375
        %v2381 = vmax.f32 %v2284, %v2377
        %2382 = vrot.lane.b32.xlu0 %v2378, 112
        %v2383 = vpop.permute.xlu0 %2382
        %2384 = vrot.lane.b32.xlu0 %v2380, 112
        %v2385 = vpop.permute.xlu0 %2384
        %2386 = vrot.lane.b32.xlu0 %v2379, 112
        %v2387 = vpop.permute.xlu0 %2386
        %2388 = vrot.lane.b32.xlu0 %v2381, 112
        %v2389 = vpop.permute.xlu0 %2388
        %v2390 = vsel %vm733, %v2383, %v2387
        %v2391 = vsel %vm733, %v2385, %v2389
        %v2392 = vsel %vm733, %v2387, %v2383
        %v2393 = vsel %vm733, %v2389, %v2385
        %v2394 = vmax.f32 %v2378, %v2390
        %v2395 = vmax.f32 %v2379, %v2392
        %v2396 = vmax.f32 %v2380, %v2391
        %v2397 = vmax.f32 %v2381, %v2393
        %2398 = vmatprep.subr.mxu0 0.0
        %2399 = vmatpush1.msra.mxu0 %v398
        %2400 = vmatprep.subr.mxu0 0.0
        %2401 = vmatpush1.msra.mxu0 %v399
        %2402 = vmatprep.subr.mxu0 0.0
        %2403 = vmatpush1.msra.mxu0 %v400
        %2404 = vmatprep.subr.mxu0 0.0
        %2405 = vmatpush1.msra.mxu0 %v401
        %2406 = vmatprep.subr.mxu0 0.0
        %2407 = vmatpush1.msra.mxu0 %v402
        %2408 = vmatprep.subr.mxu0 0.0
        %2409 = vmatpush1.msra.mxu0 %v403
        %2410 = vmatprep.subr.mxu0 0.0
        %2411 = vmatpush1.msra.mxu0 %v404
        %2412 = vmatprep.subr.mxu0 0.0
        %2413 = vmatpush1.msra.mxu0 %v405
        %2414 = vmatprep.subr.mxu0 0.0
        %2415 = vmatpush1.msra.mxu0 %v406
        %2416 = vmatprep.subr.mxu0 0.0
        %2417 = vmatpush1.msra.mxu0 %v407
        %2418 = vmatprep.subr.mxu0 0.0
        %2419 = vmatpush1.msra.mxu0 %v408
        %2420 = vmatprep.subr.mxu0 0.0
        %2421 = vmatpush1.msra.mxu0 %v409
        %2422 = vmatprep.subr.mxu0 0.0
        %2423 = vmatpush1.msra.mxu0 %v410
        %2424 = vmatprep.subr.mxu0 0.0
        %2425 = vmatpush1.msra.mxu0 %v411
        %2426 = vmatprep.subr.mxu0 0.0
        %2427 = vmatpush1.msra.mxu0 %v412
        %2428 = vmatprep.subr.mxu0 0.0
        %2429 = vmatpush1.msra.mxu0 %v413
        %2430 = vmatprep.subr.mxu0 0.0
        %2431 = vmatpush1.msra.mxu0 %v414
        %2432 = vmatprep.subr.mxu0 0.0
        %2433 = vmatpush1.msra.mxu0 %v415
        %2434 = vmatprep.subr.mxu0 0.0
        %2435 = vmatpush1.msra.mxu0 %v416
        %2436 = vmatprep.subr.mxu0 0.0
        %2437 = vmatpush1.msra.mxu0 %v417
        %2438 = vmatprep.subr.mxu0 0.0
        %2439 = vmatpush1.msra.mxu0 %v418
        %2440 = vmatprep.subr.mxu0 0.0
        %2441 = vmatpush1.msra.mxu0 %v419
        %2442 = vmatprep.subr.mxu0 0.0
        %2443 = vmatpush1.msra.mxu0 %v420
        %2444 = vmatprep.subr.mxu0 0.0
        %2445 = vmatpush1.msra.mxu0 %v421
        %2446 = vmatprep.subr.mxu0 0.0
        %2447 = vmatpush1.msra.mxu0 %v422
        %2448 = vmatprep.subr.mxu0 0.0
        %2449 = vmatpush1.msra.mxu0 %v423
        %2450 = vmatprep.subr.mxu0 0.0
        %2451 = vmatpush1.msra.mxu0 %v424
        %2452 = vmatprep.subr.mxu0 0.0
        %2453 = vmatpush1.msra.mxu0 %v425
        %2454 = vmatprep.subr.mxu0 0.0
        %2455 = vmatpush1.msra.mxu0 %v426
        %2456 = vmatprep.subr.mxu0 0.0
        %2457 = vmatpush1.msra.mxu0 %v427
        %2458 = vmatprep.subr.mxu0 0.0
        %2459 = vmatpush1.msra.mxu0 %v428
        %2460 = vmatprep.subr.mxu0 0.0
        %2461 = vmatpush1.msra.mxu0 %v429
        %2462 = vmatprep.mubr.f32.mxu0 %v2395
        %2463 = vmatmul.mubr.f32.gmra.mrb[0].mxu0 %v2394
        %v2464 = vpop.f32.mrb[0].mxu0
        %v2465 = vadd.f32 0.0, %v2464
        %v2466 = vpop.f32.mrb[0].mxu0
        %2467 = vmatprep.mubr.f32.mxu0 %v2397
        %2468 = vmatmul.mubr.f32.gmra.mrb[0].mxu0 %v2396
        %v2469 = vpop.f32.mrb[0].mxu0
        %v2470 = vadd.f32 0.0, %v2469
        %v2471 = vpop.f32.mrb[0].mxu0
        %2472 = vdwg.mxu0
        %vm2473 = vcmask 293888
        %2474 = vst.msk [vmem:[%s333] sm:$0xff] %vm2473, %v2465
        %2475 = vst.msk [vmem:[%s333 + $0x8] sm:$0xff] %vm2473, %v2470
        %p2476 = scmp.lt.s32.totalorder %s21, 1
        %s2477 = scalar_select %p2476, %s21, 1
        %s2478 = smul.addr %s2477, 4
        %s2479 = smul.addr %s2478, 8
        %s2480 = scalar_lea.vmem %s7, %s2479
        %p2481 = scmp.lt.s32.totalorder %s21, 1
        %s2482 = scalar_select %p2481, %s21, 1
        %s2483 = smul.addr %s2482, 2
        %s2484 = smul.addr %s2483, 8
        %s2485 = scalar_lea.vmem %s8, %s2484
        // Predicated region
        $region53: #{basic_encoder_block.1} parent=47 // pred_check
          %p2486 = pneg %p191
        $region54: #{basic_encoder_block.1} parent=47 // pred_check_branch
          %2488 = sbr.rel (%p2486) target = $region56
        $region55: #{basic_encoder_block.1} parent=47 // pred_region
          _
        $region56: #{basic_encoder_block.1} parent=47 // pred_fallthru
          _
        // Predicated region
        $region57: #{basic_encoder_block.1} parent=47 // pred_check
          %p2489 = pneg %p217
        $region58: #{basic_encoder_block.1} parent=47 // pred_check_branch
          %2491 = sbr.rel (%p2489) target = $region60
        $region59: #{basic_encoder_block.1} parent=47 // pred_region
          _
        $region60: #{basic_encoder_block.1} parent=47 // pred_fallthru
          _
      $region48: #{basic_encoder_block.1} parent=5 // pred_fallthru
        _
      %p2492 = scmp.le.s32.totalorder 2, %s16
      // Predicated region
      $region61: #{basic_encoder_block.1} parent=5 // pred_check
        %p2493 = pneg %p2492
      $region62: #{basic_encoder_block.1} parent=5 // pred_check_branch
        %2495 = sbr.rel (%p2493) target = $region64
      $region63: #{basic_encoder_block.1} parent=5 // pred_region
        %s2496 = ssub.s32 %s16, 2
        // Predicated region
        $region65: #{basic_encoder_block.1} parent=63 // pred_check
          %p2497 = pneg %p197
        $region66: #{basic_encoder_block.1} parent=63 // pred_check_branch
          %2499 = sbr.rel (%p2497) target = $region68
        $region67: #{basic_encoder_block.1} parent=63 // pred_region
          %p2500 = scmp.lt.s32.totalorder %s22, 1
          %s2501 = scalar_select %p2500, %s22, 1
          %s2502 = smul.addr %s2501, 4
          %s2503 = smul.addr %s2502, 8
          %s2504 = scalar_lea.vmem %s7, %s2503
        $region68: #{basic_encoder_block.1} parent=63 // pred_fallthru
          _
        // Predicated region
        $region69: #{basic_encoder_block.1} parent=63 // pred_check
          %p2505 = pneg %p223
        $region70: #{basic_encoder_block.1} parent=63 // pred_check_branch
          %2507 = sbr.rel (%p2505) target = $region72
        $region71: #{basic_encoder_block.1} parent=63 // pred_region
          %p2508 = scmp.lt.s32.totalorder %s22, 1
          %s2509 = scalar_select %p2508, %s22, 1
          %s2510 = smul.addr %s2509, 2
          %s2511 = smul.addr %s2510, 8
          %s2512 = scalar_lea.vmem %s8, %s2511
        $region72: #{basic_encoder_block.1} parent=63 // pred_fallthru
          _
      $region64: #{basic_encoder_block.1} parent=5 // pred_fallthru
        _
    $region6: #{basic_encoder_block.1} parent=1 // loop_footer
      %s20 = sadd.s32 1, %s16
    $region7: #{basic_encoder_block.1} parent=1 // loop_footer_branch
      %15 = sbr.rel target = $region3
    $region8: #{basic_encoder_block.1} parent=1 // loop_exit
      _
    %2513 = vsyncpa [#allocation3], 1
    %s2514 = scalar_lea.sflag [#allocation3], 1
    %2515 = vsyncpa %s2514, 1

</llo_original>
